<compile_context>
chip_gen: v7x
topology: tpu7x:2x2x1
jax: 0.10.0
libtpu: 0.0.40
codegen_flags: <defaults>
</compile_context>

<pallas_src>
import functools

import jax
import jax.numpy as jnp
from jax.experimental import pallas as pl
from jax.experimental.pallas import tpu as pltpu


def _lstm_fused_kernel(T, B, Bp, H,
                       seq_ref,                 # SMEM (T*B,) int32  (scalar prefetch)
                       emb_ref,                 # VMEM (V, E)  f32
                       wih_ref,                 # VMEM (E, 4H) bf16   (W_ih^T)
                       whh_ref,                 # VMEM (H, 4H) bf16   (W_hh^T)
                       bias_ref,                # VMEM (1, 4H) f32    (b_ih + b_hh)
                       wp_ref,                  # VMEM (H, 128) f32   (predictor W, lane-padded)
                       bp_ref,                  # VMEM (1, 128) f32   (predictor b, lane-padded)
                       out_ref,                 # VMEM (Bp, 128) f32
                       x_sc,                    # VMEM (T*Bp, E)  f32 scratch (gathered embeddings)
                       xg_sc):                  # VMEM (T*Bp, 4H) f32 scratch (gate pre-activations)
    G = 4 * H

    # ---- 1) embedding gather (fused glue) --------------------------------
    # Zero-init so padded batch rows stay finite (they are discarded later).
    x_sc[...] = jnp.zeros_like(x_sc)
    # Static destination rows, dynamic source row (token id from SMEM).
    for t in range(T):
        for b in range(B):
            tok = seq_ref[t * B + b]
            x_sc[pl.ds(t * Bp + b, 1), :] = emb_ref[pl.ds(tok, 1), :]

    # ---- 2) hoisted, sequence-parallel input projection ------------------
    # One (T*Bp, E) @ (E, 4H) bf16 matmul + fused-bias add (f32 accumulate).
    xg_sc[...] = (
        jnp.dot(x_sc[...].astype(jnp.bfloat16), wih_ref[...],
                preferred_element_type=jnp.float32)
        + bias_ref[...])

    # ---- 3) serial recurrence, (h, c) live in vregs ----------------------
    whh = whh_ref[...]                                          # hoisted, loop-invariant
    lane = jax.lax.broadcasted_iota(jnp.int32, (Bp, G), 1)      # hoisted lane mask
    g_mask = (lane >= 2 * H) & (lane < 3 * H)                   # tanh-quarter (g gate)

    def step(t, carry):
        h_prev, c_prev = carry                                  # (Bp, H) f32 vregs
        off = pl.multiple_of(t * Bp, Bp)
        xg_t = xg_sc[pl.ds(off, Bp), :]                         # (Bp, 4H) aligned tile
        # Fused lane-dense gate matmul: (Bp,H)bf16 @ (H,4H)bf16 -> f32
        gates = xg_t + jnp.dot(h_prev.astype(jnp.bfloat16), whh,
                               preferred_element_type=jnp.float32)
        # Full-vreg activations: 2 EUP passes + 1 select (PyTorch order i|f|g|o).
        sig = jax.nn.sigmoid(gates)
        th = jnp.tanh(gates)
        act = jnp.where(g_mask, th, sig)                        # [sig(i)|sig(f)|tanh(g)|sig(o)]
        i_g = act[:, 0 * H:1 * H]
        f_g = act[:, 1 * H:2 * H]
        g_g = act[:, 2 * H:3 * H]
        o_g = act[:, 3 * H:4 * H]
        c_new = f_g * c_prev + i_g * g_g
        h_new = o_g * jnp.tanh(c_new)
        return h_new, c_new

    h0 = jnp.zeros((Bp, H), jnp.float32)
    c0 = jnp.zeros((Bp, H), jnp.float32)
    # Capped unroll: full unroll at T=8, bounded instruction/vreg footprint at large T.
    h_fin, _ = jax.lax.fori_loop(0, T, step, (h0, c0), unroll=min(T, 8))

    # ---- 4) predictor (lane-dense padded output) + bias ------------------
    out_ref[...] = (jnp.dot(h_fin, wp_ref[...],
                            preferred_element_type=jnp.float32)
                    + bp_ref[...])


@jax.jit
def simple_lstm_forward(seq, params):
    """seq: (T, B) int32 token ids -> (B, 2) logits (matches PyTorch module)."""
    emb = params["embedding"]          # (V, E)
    w_ih = params["w_ih"]              # (4H, E)
    w_hh = params["w_hh"]              # (4H, H)
    b_ih = params["b_ih"]              # (4H,)
    b_hh = params["b_hh"]              # (4H,)
    w_p = params["w_pred"]             # (2, H)
    b_p = params["b_pred"]             # (2,)

    T, B = seq.shape
    V, E = emb.shape
    H = w_hh.shape[1]
    G = 4 * H
    Bp = max(8, ((B + 7) // 8) * 8)    # sublane-aligned batch
    P = 128                            # lane-dense predictor output width

    # Tiny, one-time parameter re-layouts (fused by jit into the same dispatch).
    seq_flat = seq.reshape(T * B).astype(jnp.int32)
    wih_t = jnp.transpose(w_ih).astype(jnp.bfloat16)            # (E, 4H)
    whh_t = jnp.transpose(w_hh).astype(jnp.bfloat16)            # (H, 4H)
    bias = (b_ih + b_hh).astype(jnp.float32).reshape(1, G)      # fused LSTM bias
    wp_pad = jnp.zeros((H, P), jnp.float32).at[:, :2].set(w_p.T.astype(jnp.float32))
    bp_pad = jnp.zeros((1, P), jnp.float32).at[:, :2].set(b_p.astype(jnp.float32)[None, :])

    kernel = functools.partial(_lstm_fused_kernel, T, B, Bp, H)

    out_pad = pl.pallas_call(
        kernel,
        out_shape=jax.ShapeDtypeStruct((Bp, P), jnp.float32),
        grid_spec=pltpu.PrefetchScalarGridSpec(
            num_scalar_prefetch=1,     # token ids -> SMEM
            grid=(1,),                 # single program; time handled in-kernel
            in_specs=[
                pl.BlockSpec((V, E), lambda i, *_: (0, 0)),     # embedding table
                pl.BlockSpec((E, G), lambda i, *_: (0, 0)),     # W_ih^T (bf16)
                pl.BlockSpec((H, G), lambda i, *_: (0, 0)),     # W_hh^T (bf16)
                pl.BlockSpec((1, G), lambda i, *_: (0, 0)),     # fused bias
                pl.BlockSpec((H, P), lambda i, *_: (0, 0)),     # predictor W (padded)
                pl.BlockSpec((1, P), lambda i, *_: (0, 0)),     # predictor b (padded)
            ],
            out_specs=pl.BlockSpec((Bp, P), lambda i, *_: (0, 0)),
            scratch_shapes=[
                pltpu.VMEM((T * Bp, E), jnp.float32),   # gathered embeddings
                pltpu.VMEM((T * Bp, G), jnp.float32),   # gate pre-activations
            ],
        ),
        compiler_params=pltpu.CompilerParams(
            dimension_semantics=("arbitrary",)),
    )(seq_flat, emb.astype(jnp.float32), wih_t, whh_t, bias, wp_pad, bp_pad)

    # Un-pad: real batch rows, first 2 lanes (bias already added in-kernel).
    return out_pad[:B, :2]


def simple_lstm_reference(seq, params):
    """Pure-JAX reference mirroring PyTorch nn.Embedding + nn.LSTM + nn.Linear."""
    emb = params["embedding"]
    w_ih, w_hh = params["w_ih"], params["w_hh"]
    b_ih, b_hh = params["b_ih"], params["b_hh"]
    w_p, b_p = params["w_pred"], params["b_pred"]
    H = w_hh.shape[1]
    x = jnp.take(emb, seq, axis=0)                     # (T, B, E)
    T, B, E = x.shape
    h = jnp.zeros((B, H), jnp.float32)
    c = jnp.zeros((B, H), jnp.float32)

    def step(carry, x_t):
        h, c = carry
        gates = x_t @ w_ih.T + b_ih + h @ w_hh.T + b_hh
        i = jax.nn.sigmoid(gates[:, 0:H])
        f = jax.nn.sigmoid(gates[:, H:2 * H])
        g = jnp.tanh(gates[:, 2 * H:3 * H])
        o = jax.nn.sigmoid(gates[:, 3 * H:4 * H])
        c = f * c + i * g
        h = o * jnp.tanh(c)
        return (h, c), None

    (h, c), _ = jax.lax.scan(step, (h, c), x)
    return h @ w_p.T + b_p


if __name__ == "__main__":
    # Small shapes consistent with the module's forward pass.
    hidden_size = 32
    embedding_dim = 16
    vocab_size = 50
    seq_len = 8
    batch = 2

    key = jax.random.PRNGKey(0)
    keys = jax.random.split(key, 8)
    params = {
        "embedding": jax.random.normal(keys[0], (vocab_size, embedding_dim),
                                       jnp.float32) * 0.1,
        "w_ih": jax.random.normal(keys[1], (4 * hidden_size, embedding_dim),
                                  jnp.float32) * 0.1,
        "w_hh": jax.random.normal(keys[2], (4 * hidden_size, hidden_size),
                                  jnp.float32) * 0.1,
        "b_ih": jax.random.normal(keys[3], (4 * hidden_size,), jnp.float32) * 0.1,
        "b_hh": jax.random.normal(keys[4], (4 * hidden_size,), jnp.float32) * 0.1,
        "w_pred": jax.random.normal(keys[5], (2, hidden_size), jnp.float32) * 0.1,
        "b_pred": jax.random.normal(keys[6], (2,), jnp.float32) * 0.1,
    }

    seq = jax.random.randint(keys[7], (seq_len, batch), 0, vocab_size,
                             dtype=jnp.int32)

    preds = simple_lstm_forward(seq, params)
    preds = jax.block_until_ready(preds)

    ref = simple_lstm_reference(seq, params)
    assert preds.shape == (batch, 2)
    # bf16 MXU operands (f32 accumulation) inside the kernel => slightly looser
    # tolerance vs the pure-f32 reference.
    assert jnp.allclose(preds, ref, atol=2e-3, rtol=2e-3)

    print("KERNEL_OK")
</pallas_src>

<mosaic_0001>
module attributes {stable_mosaic.version = 11 : i64} {
  func.func @_lstm_fused_kernel(%arg0: i32, %arg1: memref<16xi32, #tpu.memory_space<smem>>, %arg2: memref<50x16xf32, #tpu.memory_space<vmem>>, %arg3: memref<16x128xbf16, #tpu.memory_space<vmem>>, %arg4: memref<32x128xbf16, #tpu.memory_space<vmem>>, %arg5: memref<1x128xf32, #tpu.memory_space<vmem>>, %arg6: memref<32x128xf32, #tpu.memory_space<vmem>>, %arg7: memref<1x128xf32, #tpu.memory_space<vmem>>, %arg8: memref<8x128xf32, #tpu.memory_space<vmem>>, %arg9: memref<64x16xf32, #tpu.memory_space<vmem>>, %arg10: memref<64x128xf32, #tpu.memory_space<vmem>>) attributes {dimension_semantics = [#tpu.dimension_semantics<arbitrary>], iteration_bounds = array<i64: 1>, scalar_prefetch = 1 : i64, scratch_operands = 2 : i64, tpu.core_type = #tpu.core_type<tc>, window_params = [{pipeline_mode = #tpu.pipeline_mode<synchronous>, transform_indices = @transform_0, window_bounds = array<i64: 50, 16>}, {pipeline_mode = #tpu.pipeline_mode<synchronous>, transform_indices = @transform_1, window_bounds = array<i64: 16, 128>}, {pipeline_mode = #tpu.pipeline_mode<synchronous>, transform_indices = @transform_2, window_bounds = array<i64: 32, 128>}, {pipeline_mode = #tpu.pipeline_mode<synchronous>, transform_indices = @transform_3, window_bounds = array<i64: 1, 128>}, {pipeline_mode = #tpu.pipeline_mode<synchronous>, transform_indices = @transform_4, window_bounds = array<i64: 32, 128>}, {pipeline_mode = #tpu.pipeline_mode<synchronous>, transform_indices = @transform_5, window_bounds = array<i64: 1, 128>}, {pipeline_mode = #tpu.pipeline_mode<synchronous>, transform_indices = @transform_6, window_bounds = array<i64: 8, 128>}]} {
    %cst = arith.constant 0.000000e+00 : f32
    %0 = vector.broadcast %cst : f32 to vector<64x16xf32>
    %c0 = arith.constant 0 : index
    %c0_0 = arith.constant 0 : index
    %1 = vector.load %arg9[%c0, %c0_0] : memref<64x16xf32, #tpu.memory_space<vmem>>, vector<64x16xf32>
    tpu.vector_store %arg9[%c0, %c0_0], %0 {strides = array<i32>} : memref<64x16xf32, #tpu.memory_space<vmem>>, vector<64x16xf32>,
    %c0_1 = arith.constant 0 : index
    %2 = memref.load %arg1[%c0_1] : memref<16xi32, #tpu.memory_space<smem>>
    %3 = arith.index_cast %2 : i32 to index
    %c0_2 = arith.constant 0 : index
    %4 = vector.load %arg2[%3, %c0_2] : memref<50x16xf32, #tpu.memory_space<vmem>>, vector<1x16xf32>
    %c0_3 = arith.constant 0 : index
    %c0_4 = arith.constant 0 : index
    %5 = vector.load %arg9[%c0_3, %c0_4] : memref<64x16xf32, #tpu.memory_space<vmem>>, vector<1x16xf32>
    tpu.vector_store %arg9[%c0_3, %c0_4], %4 {strides = array<i32>} : memref<64x16xf32, #tpu.memory_space<vmem>>, vector<1x16xf32>,
    %c1 = arith.constant 1 : index
    %6 = memref.load %arg1[%c1] : memref<16xi32, #tpu.memory_space<smem>>
    %7 = arith.index_cast %6 : i32 to index
    %c0_5 = arith.constant 0 : index
    %8 = vector.load %arg2[%7, %c0_5] : memref<50x16xf32, #tpu.memory_space<vmem>>, vector<1x16xf32>
    %c1_6 = arith.constant 1 : index
    %c0_7 = arith.constant 0 : index
    %9 = vector.load %arg9[%c1_6, %c0_7] : memref<64x16xf32, #tpu.memory_space<vmem>>, vector<1x16xf32>
    tpu.vector_store %arg9[%c1_6, %c0_7], %8 {strides = array<i32>} : memref<64x16xf32, #tpu.memory_space<vmem>>, vector<1x16xf32>,
    %c2 = arith.constant 2 : index
    %10 = memref.load %arg1[%c2] : memref<16xi32, #tpu.memory_space<smem>>
    %11 = arith.index_cast %10 : i32 to index
    %c0_8 = arith.constant 0 : index
    %12 = vector.load %arg2[%11, %c0_8] : memref<50x16xf32, #tpu.memory_space<vmem>>, vector<1x16xf32>
    %c8 = arith.constant 8 : index
    %c0_9 = arith.constant 0 : index
    %13 = vector.load %arg9[%c8, %c0_9] : memref<64x16xf32, #tpu.memory_space<vmem>>, vector<1x16xf32>
    tpu.vector_store %arg9[%c8, %c0_9], %12 {strides = array<i32>} : memref<64x16xf32, #tpu.memory_space<vmem>>, vector<1x16xf32>,
    %c3 = arith.constant 3 : index
    %14 = memref.load %arg1[%c3] : memref<16xi32, #tpu.memory_space<smem>>
    %15 = arith.index_cast %14 : i32 to index
    %c0_10 = arith.constant 0 : index
    %16 = vector.load %arg2[%15, %c0_10] : memref<50x16xf32, #tpu.memory_space<vmem>>, vector<1x16xf32>
    %c9 = arith.constant 9 : index
    %c0_11 = arith.constant 0 : index
    %17 = vector.load %arg9[%c9, %c0_11] : memref<64x16xf32, #tpu.memory_space<vmem>>, vector<1x16xf32>
    tpu.vector_store %arg9[%c9, %c0_11], %16 {strides = array<i32>} : memref<64x16xf32, #tpu.memory_space<vmem>>, vector<1x16xf32>,
    %c4 = arith.constant 4 : index
    %18 = memref.load %arg1[%c4] : memref<16xi32, #tpu.memory_space<smem>>
    %19 = arith.index_cast %18 : i32 to index
    %c0_12 = arith.constant 0 : index
    %20 = vector.load %arg2[%19, %c0_12] : memref<50x16xf32, #tpu.memory_space<vmem>>, vector<1x16xf32>
    %c16 = arith.constant 16 : index
    %c0_13 = arith.constant 0 : index
    %21 = vector.load %arg9[%c16, %c0_13] : memref<64x16xf32, #tpu.memory_space<vmem>>, vector<1x16xf32>
    tpu.vector_store %arg9[%c16, %c0_13], %20 {strides = array<i32>} : memref<64x16xf32, #tpu.memory_space<vmem>>, vector<1x16xf32>,
    %c5 = arith.constant 5 : index
    %22 = memref.load %arg1[%c5] : memref<16xi32, #tpu.memory_space<smem>>
    %23 = arith.index_cast %22 : i32 to index
    %c0_14 = arith.constant 0 : index
    %24 = vector.load %arg2[%23, %c0_14] : memref<50x16xf32, #tpu.memory_space<vmem>>, vector<1x16xf32>
    %c17 = arith.constant 17 : index
    %c0_15 = arith.constant 0 : index
    %25 = vector.load %arg9[%c17, %c0_15] : memref<64x16xf32, #tpu.memory_space<vmem>>, vector<1x16xf32>
    tpu.vector_store %arg9[%c17, %c0_15], %24 {strides = array<i32>} : memref<64x16xf32, #tpu.memory_space<vmem>>, vector<1x16xf32>,
    %c6 = arith.constant 6 : index
    %26 = memref.load %arg1[%c6] : memref<16xi32, #tpu.memory_space<smem>>
    %27 = arith.index_cast %26 : i32 to index
    %c0_16 = arith.constant 0 : index
    %28 = vector.load %arg2[%27, %c0_16] : memref<50x16xf32, #tpu.memory_space<vmem>>, vector<1x16xf32>
    %c24 = arith.constant 24 : index
    %c0_17 = arith.constant 0 : index
    %29 = vector.load %arg9[%c24, %c0_17] : memref<64x16xf32, #tpu.memory_space<vmem>>, vector<1x16xf32>
    tpu.vector_store %arg9[%c24, %c0_17], %28 {strides = array<i32>} : memref<64x16xf32, #tpu.memory_space<vmem>>, vector<1x16xf32>,
    %c7 = arith.constant 7 : index
    %30 = memref.load %arg1[%c7] : memref<16xi32, #tpu.memory_space<smem>>
    %31 = arith.index_cast %30 : i32 to index
    %c0_18 = arith.constant 0 : index
    %32 = vector.load %arg2[%31, %c0_18] : memref<50x16xf32, #tpu.memory_space<vmem>>, vector<1x16xf32>
    %c25 = arith.constant 25 : index
    %c0_19 = arith.constant 0 : index
    %33 = vector.load %arg9[%c25, %c0_19] : memref<64x16xf32, #tpu.memory_space<vmem>>, vector<1x16xf32>
    tpu.vector_store %arg9[%c25, %c0_19], %32 {strides = array<i32>} : memref<64x16xf32, #tpu.memory_space<vmem>>, vector<1x16xf32>,
    %c8_20 = arith.constant 8 : index
    %34 = memref.load %arg1[%c8_20] : memref<16xi32, #tpu.memory_space<smem>>
    %35 = arith.index_cast %34 : i32 to index
    %c0_21 = arith.constant 0 : index
    %36 = vector.load %arg2[%35, %c0_21] : memref<50x16xf32, #tpu.memory_space<vmem>>, vector<1x16xf32>
    %c32 = arith.constant 32 : index
    %c0_22 = arith.constant 0 : index
    %37 = vector.load %arg9[%c32, %c0_22] : memref<64x16xf32, #tpu.memory_space<vmem>>, vector<1x16xf32>
    tpu.vector_store %arg9[%c32, %c0_22], %36 {strides = array<i32>} : memref<64x16xf32, #tpu.memory_space<vmem>>, vector<1x16xf32>,
    %c9_23 = arith.constant 9 : index
    %38 = memref.load %arg1[%c9_23] : memref<16xi32, #tpu.memory_space<smem>>
    %39 = arith.index_cast %38 : i32 to index
    %c0_24 = arith.constant 0 : index
    %40 = vector.load %arg2[%39, %c0_24] : memref<50x16xf32, #tpu.memory_space<vmem>>, vector<1x16xf32>
    %c33 = arith.constant 33 : index
    %c0_25 = arith.constant 0 : index
    %41 = vector.load %arg9[%c33, %c0_25] : memref<64x16xf32, #tpu.memory_space<vmem>>, vector<1x16xf32>
    tpu.vector_store %arg9[%c33, %c0_25], %40 {strides = array<i32>} : memref<64x16xf32, #tpu.memory_space<vmem>>, vector<1x16xf32>,
    %c10 = arith.constant 10 : index
    %42 = memref.load %arg1[%c10] : memref<16xi32, #tpu.memory_space<smem>>
    %43 = arith.index_cast %42 : i32 to index
    %c0_26 = arith.constant 0 : index
    %44 = vector.load %arg2[%43, %c0_26] : memref<50x16xf32, #tpu.memory_space<vmem>>, vector<1x16xf32>
    %c40 = arith.constant 40 : index
    %c0_27 = arith.constant 0 : index
    %45 = vector.load %arg9[%c40, %c0_27] : memref<64x16xf32, #tpu.memory_space<vmem>>, vector<1x16xf32>
    tpu.vector_store %arg9[%c40, %c0_27], %44 {strides = array<i32>} : memref<64x16xf32, #tpu.memory_space<vmem>>, vector<1x16xf32>,
    %c11 = arith.constant 11 : index
    %46 = memref.load %arg1[%c11] : memref<16xi32, #tpu.memory_space<smem>>
    %47 = arith.index_cast %46 : i32 to index
    %c0_28 = arith.constant 0 : index
    %48 = vector.load %arg2[%47, %c0_28] : memref<50x16xf32, #tpu.memory_space<vmem>>, vector<1x16xf32>
    %c41 = arith.constant 41 : index
    %c0_29 = arith.constant 0 : index
    %49 = vector.load %arg9[%c41, %c0_29] : memref<64x16xf32, #tpu.memory_space<vmem>>, vector<1x16xf32>
    tpu.vector_store %arg9[%c41, %c0_29], %48 {strides = array<i32>} : memref<64x16xf32, #tpu.memory_space<vmem>>, vector<1x16xf32>,
    %c12 = arith.constant 12 : index
    %50 = memref.load %arg1[%c12] : memref<16xi32, #tpu.memory_space<smem>>
    %51 = arith.index_cast %50 : i32 to index
    %c0_30 = arith.constant 0 : index
    %52 = vector.load %arg2[%51, %c0_30] : memref<50x16xf32, #tpu.memory_space<vmem>>, vector<1x16xf32>
    %c48 = arith.constant 48 : index
    %c0_31 = arith.constant 0 : index
    %53 = vector.load %arg9[%c48, %c0_31] : memref<64x16xf32, #tpu.memory_space<vmem>>, vector<1x16xf32>
    tpu.vector_store %arg9[%c48, %c0_31], %52 {strides = array<i32>} : memref<64x16xf32, #tpu.memory_space<vmem>>, vector<1x16xf32>,
    %c13 = arith.constant 13 : index
    %54 = memref.load %arg1[%c13] : memref<16xi32, #tpu.memory_space<smem>>
    %55 = arith.index_cast %54 : i32 to index
    %c0_32 = arith.constant 0 : index
    %56 = vector.load %arg2[%55, %c0_32] : memref<50x16xf32, #tpu.memory_space<vmem>>, vector<1x16xf32>
    %c49 = arith.constant 49 : index
    %c0_33 = arith.constant 0 : index
    %57 = vector.load %arg9[%c49, %c0_33] : memref<64x16xf32, #tpu.memory_space<vmem>>, vector<1x16xf32>
    tpu.vector_store %arg9[%c49, %c0_33], %56 {strides = array<i32>} : memref<64x16xf32, #tpu.memory_space<vmem>>, vector<1x16xf32>,
    %c14 = arith.constant 14 : index
    %58 = memref.load %arg1[%c14] : memref<16xi32, #tpu.memory_space<smem>>
    %59 = arith.index_cast %58 : i32 to index
    %c0_34 = arith.constant 0 : index
    %60 = vector.load %arg2[%59, %c0_34] : memref<50x16xf32, #tpu.memory_space<vmem>>, vector<1x16xf32>
    %c56 = arith.constant 56 : index
    %c0_35 = arith.constant 0 : index
    %61 = vector.load %arg9[%c56, %c0_35] : memref<64x16xf32, #tpu.memory_space<vmem>>, vector<1x16xf32>
    tpu.vector_store %arg9[%c56, %c0_35], %60 {strides = array<i32>} : memref<64x16xf32, #tpu.memory_space<vmem>>, vector<1x16xf32>,
    %c15 = arith.constant 15 : index
    %62 = memref.load %arg1[%c15] : memref<16xi32, #tpu.memory_space<smem>>
    %63 = arith.index_cast %62 : i32 to index
    %c0_36 = arith.constant 0 : index
    %64 = vector.load %arg2[%63, %c0_36] : memref<50x16xf32, #tpu.memory_space<vmem>>, vector<1x16xf32>
    %c57 = arith.constant 57 : index
    %c0_37 = arith.constant 0 : index
    %65 = vector.load %arg9[%c57, %c0_37] : memref<64x16xf32, #tpu.memory_space<vmem>>, vector<1x16xf32>
    tpu.vector_store %arg9[%c57, %c0_37], %64 {strides = array<i32>} : memref<64x16xf32, #tpu.memory_space<vmem>>, vector<1x16xf32>,
    %c0_38 = arith.constant 0 : index
    %c0_39 = arith.constant 0 : index
    %66 = vector.load %arg9[%c0_38, %c0_39] : memref<64x16xf32, #tpu.memory_space<vmem>>, vector<64x16xf32>
    %67 = arith.truncf %66 : vector<64x16xf32> to vector<64x16xbf16>
    %c0_40 = arith.constant 0 : index
    %c0_41 = arith.constant 0 : index
    %68 = vector.load %arg3[%c0_40, %c0_41] : memref<16x128xbf16, #tpu.memory_space<vmem>>, vector<16x128xbf16>
    %cst_42 = arith.constant dense<0.000000e+00> : vector<64x128xf32>
    %69 = tpu.matmul %67, %68, %cst_42 {dimension_numbers = #tpu.dot_dimension_numbers<[1], [0], [0], [1], [0, 0, 1, 1], [], []>} : vector<64x16xbf16>, vector<16x128xbf16>, vector<64x128xf32> -> vector<64x128xf32>
    %c0_43 = arith.constant 0 : index
    %c0_44 = arith.constant 0 : index
    %70 = vector.load %arg5[%c0_43, %c0_44] : memref<1x128xf32, #tpu.memory_space<vmem>>, vector<1x128xf32>
    %71 = vector.broadcast %70 : vector<1x128xf32> to vector<64x128xf32>
    %72 = arith.addf %69, %71 : vector<64x128xf32>
    %c0_45 = arith.constant 0 : index
    %c0_46 = arith.constant 0 : index
    %73 = vector.load %arg10[%c0_45, %c0_46] : memref<64x128xf32, #tpu.memory_space<vmem>>, vector<64x128xf32>
    tpu.vector_store %arg10[%c0_45, %c0_46], %72 {strides = array<i32>} : memref<64x128xf32, #tpu.memory_space<vmem>>, vector<64x128xf32>,
    %c0_47 = arith.constant 0 : index
    %c0_48 = arith.constant 0 : index
    %74 = vector.load %arg4[%c0_47, %c0_48] : memref<32x128xbf16, #tpu.memory_space<vmem>>, vector<32x128xbf16>
    %75 = tpu.iota {dimensions = array<i32: 1>} : vector<8x128xi32>
    %c64_i32 = arith.constant 64 : i32
    %76 = vector.broadcast %c64_i32 : i32 to vector<8x128xi32>
    %77 = arith.cmpi sge, %75, %76 : vector<8x128xi32>
    %c96_i32 = arith.constant 96 : i32
    %78 = vector.broadcast %c96_i32 : i32 to vector<8x128xi32>
    %79 = arith.cmpi slt, %75, %78 : vector<8x128xi32>
    %80 = arith.andi %77, %79 : vector<8x128xi1>
    %cst_49 = arith.constant 0.000000e+00 : f32
    %81 = vector.broadcast %cst_49 : f32 to vector<8x32xf32>
    %cst_50 = arith.constant 0.000000e+00 : f32
    %82 = vector.broadcast %cst_50 : f32 to vector<8x32xf32>
    %c0_i32 = arith.constant 0 : i32
    %c8_i32 = arith.constant 8 : i32
    %83 = arith.muli %c0_i32, %c8_i32 : i32
    %84 = tpu.assume_multiple %83, 8 : i32
    %85 = arith.index_cast %84 : i32 to index
    %c0_51 = arith.constant 0 : index
    %86 = vector.load %arg10[%85, %c0_51] : memref<64x128xf32, #tpu.memory_space<vmem>>, vector<8x128xf32>
    %87 = arith.truncf %81 : vector<8x32xf32> to vector<8x32xbf16>
    %cst_52 = arith.constant dense<0.000000e+00> : vector<8x128xf32>
    %88 = tpu.matmul %87, %74, %cst_52 {dimension_numbers = #tpu.dot_dimension_numbers<[1], [0], [0], [1], [0, 0, 1, 1], [], []>} : vector<8x32xbf16>, vector<32x128xbf16>, vector<8x128xf32> -> vector<8x128xf32>
    %89 = arith.addf %86, %88 : vector<8x128xf32>
    %90 = arith.negf %89 : vector<8x128xf32>
    %91 = math.exp %90 : vector<8x128xf32>
    %cst_53 = arith.constant 1.000000e+00 : f32
    %92 = vector.broadcast %cst_53 : f32 to vector<8x128xf32>
    %93 = arith.addf %92, %91 : vector<8x128xf32>
    %94 = arith.divf %92, %93 : vector<8x128xf32>
    %95 = math.tanh %89 : vector<8x128xf32>
    %96 = arith.select %80, %95, %94 : vector<8x128xi1>, vector<8x128xf32>
    %97 = vector.extract_strided_slice %96 {offsets = [0, 0], sizes = [8, 32], strides = [1, 1]} : vector<8x128xf32> to vector<8x32xf32>
    %98 = vector.extract_strided_slice %96 {offsets = [0, 32], sizes = [8, 32], strides = [1, 1]} : vector<8x128xf32> to vector<8x32xf32>
    %99 = vector.extract_strided_slice %96 {offsets = [0, 64], sizes = [8, 32], strides = [1, 1]} : vector<8x128xf32> to vector<8x32xf32>
    %100 = vector.extract_strided_slice %96 {offsets = [0, 96], sizes = [8, 32], strides = [1, 1]} : vector<8x128xf32> to vector<8x32xf32>
    %101 = arith.mulf %98, %82 : vector<8x32xf32>
    %102 = arith.mulf %97, %99 : vector<8x32xf32>
    %103 = arith.addf %101, %102 : vector<8x32xf32>
    %104 = math.tanh %103 : vector<8x32xf32>
    %105 = arith.mulf %100, %104 : vector<8x32xf32>
    %c1_i32 = arith.constant 1 : i32
    %c8_i32_54 = arith.constant 8 : i32
    %106 = arith.muli %c1_i32, %c8_i32_54 : i32
    %107 = tpu.assume_multiple %106, 8 : i32
    %108 = arith.index_cast %107 : i32 to index
    %c0_55 = arith.constant 0 : index
    %109 = vector.load %arg10[%108, %c0_55] : memref<64x128xf32, #tpu.memory_space<vmem>>, vector<8x128xf32>
    %110 = arith.truncf %105 : vector<8x32xf32> to vector<8x32xbf16>
    %cst_56 = arith.constant dense<0.000000e+00> : vector<8x128xf32>
    %111 = tpu.matmul %110, %74, %cst_56 {dimension_numbers = #tpu.dot_dimension_numbers<[1], [0], [0], [1], [0, 0, 1, 1], [], []>} : vector<8x32xbf16>, vector<32x128xbf16>, vector<8x128xf32> -> vector<8x128xf32>
    %112 = arith.addf %109, %111 : vector<8x128xf32>
    %113 = arith.negf %112 : vector<8x128xf32>
    %114 = math.exp %113 : vector<8x128xf32>
    %cst_57 = arith.constant 1.000000e+00 : f32
    %115 = vector.broadcast %cst_57 : f32 to vector<8x128xf32>
    %116 = arith.addf %115, %114 : vector<8x128xf32>
    %117 = arith.divf %115, %116 : vector<8x128xf32>
    %118 = math.tanh %112 : vector<8x128xf32>
    %119 = arith.select %80, %118, %117 : vector<8x128xi1>, vector<8x128xf32>
    %120 = vector.extract_strided_slice %119 {offsets = [0, 0], sizes = [8, 32], strides = [1, 1]} : vector<8x128xf32> to vector<8x32xf32>
    %121 = vector.extract_strided_slice %119 {offsets = [0, 32], sizes = [8, 32], strides = [1, 1]} : vector<8x128xf32> to vector<8x32xf32>
    %122 = vector.extract_strided_slice %119 {offsets = [0, 64], sizes = [8, 32], strides = [1, 1]} : vector<8x128xf32> to vector<8x32xf32>
    %123 = vector.extract_strided_slice %119 {offsets = [0, 96], sizes = [8, 32], strides = [1, 1]} : vector<8x128xf32> to vector<8x32xf32>
    %124 = arith.mulf %121, %103 : vector<8x32xf32>
    %125 = arith.mulf %120, %122 : vector<8x32xf32>
    %126 = arith.addf %124, %125 : vector<8x32xf32>
    %127 = math.tanh %126 : vector<8x32xf32>
    %128 = arith.mulf %123, %127 : vector<8x32xf32>
    %c2_i32 = arith.constant 2 : i32
    %c8_i32_58 = arith.constant 8 : i32
    %129 = arith.muli %c2_i32, %c8_i32_58 : i32
    %130 = tpu.assume_multiple %129, 8 : i32
    %131 = arith.index_cast %130 : i32 to index
    %c0_59 = arith.constant 0 : index
    %132 = vector.load %arg10[%131, %c0_59] : memref<64x128xf32, #tpu.memory_space<vmem>>, vector<8x128xf32>
    %133 = arith.truncf %128 : vector<8x32xf32> to vector<8x32xbf16>
    %cst_60 = arith.constant dense<0.000000e+00> : vector<8x128xf32>
    %134 = tpu.matmul %133, %74, %cst_60 {dimension_numbers = #tpu.dot_dimension_numbers<[1], [0], [0], [1], [0, 0, 1, 1], [], []>} : vector<8x32xbf16>, vector<32x128xbf16>, vector<8x128xf32> -> vector<8x128xf32>
    %135 = arith.addf %132, %134 : vector<8x128xf32>
    %136 = arith.negf %135 : vector<8x128xf32>
    %137 = math.exp %136 : vector<8x128xf32>
    %cst_61 = arith.constant 1.000000e+00 : f32
    %138 = vector.broadcast %cst_61 : f32 to vector<8x128xf32>
    %139 = arith.addf %138, %137 : vector<8x128xf32>
    %140 = arith.divf %138, %139 : vector<8x128xf32>
    %141 = math.tanh %135 : vector<8x128xf32>
    %142 = arith.select %80, %141, %140 : vector<8x128xi1>, vector<8x128xf32>
    %143 = vector.extract_strided_slice %142 {offsets = [0, 0], sizes = [8, 32], strides = [1, 1]} : vector<8x128xf32> to vector<8x32xf32>
    %144 = vector.extract_strided_slice %142 {offsets = [0, 32], sizes = [8, 32], strides = [1, 1]} : vector<8x128xf32> to vector<8x32xf32>
    %145 = vector.extract_strided_slice %142 {offsets = [0, 64], sizes = [8, 32], strides = [1, 1]} : vector<8x128xf32> to vector<8x32xf32>
    %146 = vector.extract_strided_slice %142 {offsets = [0, 96], sizes = [8, 32], strides = [1, 1]} : vector<8x128xf32> to vector<8x32xf32>
    %147 = arith.mulf %144, %126 : vector<8x32xf32>
    %148 = arith.mulf %143, %145 : vector<8x32xf32>
    %149 = arith.addf %147, %148 : vector<8x32xf32>
    %150 = math.tanh %149 : vector<8x32xf32>
    %151 = arith.mulf %146, %150 : vector<8x32xf32>
    %c3_i32 = arith.constant 3 : i32
    %c8_i32_62 = arith.constant 8 : i32
    %152 = arith.muli %c3_i32, %c8_i32_62 : i32
    %153 = tpu.assume_multiple %152, 8 : i32
    %154 = arith.index_cast %153 : i32 to index
    %c0_63 = arith.constant 0 : index
    %155 = vector.load %arg10[%154, %c0_63] : memref<64x128xf32, #tpu.memory_space<vmem>>, vector<8x128xf32>
    %156 = arith.truncf %151 : vector<8x32xf32> to vector<8x32xbf16>
    %cst_64 = arith.constant dense<0.000000e+00> : vector<8x128xf32>
    %157 = tpu.matmul %156, %74, %cst_64 {dimension_numbers = #tpu.dot_dimension_numbers<[1], [0], [0], [1], [0, 0, 1, 1], [], []>} : vector<8x32xbf16>, vector<32x128xbf16>, vector<8x128xf32> -> vector<8x128xf32>
    %158 = arith.addf %155, %157 : vector<8x128xf32>
    %159 = arith.negf %158 : vector<8x128xf32>
    %160 = math.exp %159 : vector<8x128xf32>
    %cst_65 = arith.constant 1.000000e+00 : f32
    %161 = vector.broadcast %cst_65 : f32 to vector<8x128xf32>
    %162 = arith.addf %161, %160 : vector<8x128xf32>
    %163 = arith.divf %161, %162 : vector<8x128xf32>
    %164 = math.tanh %158 : vector<8x128xf32>
    %165 = arith.select %80, %164, %163 : vector<8x128xi1>, vector<8x128xf32>
    %166 = vector.extract_strided_slice %165 {offsets = [0, 0], sizes = [8, 32], strides = [1, 1]} : vector<8x128xf32> to vector<8x32xf32>
    %167 = vector.extract_strided_slice %165 {offsets = [0, 32], sizes = [8, 32], strides = [1, 1]} : vector<8x128xf32> to vector<8x32xf32>
    %168 = vector.extract_strided_slice %165 {offsets = [0, 64], sizes = [8, 32], strides = [1, 1]} : vector<8x128xf32> to vector<8x32xf32>
    %169 = vector.extract_strided_slice %165 {offsets = [0, 96], sizes = [8, 32], strides = [1, 1]} : vector<8x128xf32> to vector<8x32xf32>
    %170 = arith.mulf %167, %149 : vector<8x32xf32>
    %171 = arith.mulf %166, %168 : vector<8x32xf32>
    %172 = arith.addf %170, %171 : vector<8x32xf32>
    %173 = math.tanh %172 : vector<8x32xf32>
    %174 = arith.mulf %169, %173 : vector<8x32xf32>
    %c4_i32 = arith.constant 4 : i32
    %c8_i32_66 = arith.constant 8 : i32
    %175 = arith.muli %c4_i32, %c8_i32_66 : i32
    %176 = tpu.assume_multiple %175, 8 : i32
    %177 = arith.index_cast %176 : i32 to index
    %c0_67 = arith.constant 0 : index
    %178 = vector.load %arg10[%177, %c0_67] : memref<64x128xf32, #tpu.memory_space<vmem>>, vector<8x128xf32>
    %179 = arith.truncf %174 : vector<8x32xf32> to vector<8x32xbf16>
    %cst_68 = arith.constant dense<0.000000e+00> : vector<8x128xf32>
    %180 = tpu.matmul %179, %74, %cst_68 {dimension_numbers = #tpu.dot_dimension_numbers<[1], [0], [0], [1], [0, 0, 1, 1], [], []>} : vector<8x32xbf16>, vector<32x128xbf16>, vector<8x128xf32> -> vector<8x128xf32>
    %181 = arith.addf %178, %180 : vector<8x128xf32>
    %182 = arith.negf %181 : vector<8x128xf32>
    %183 = math.exp %182 : vector<8x128xf32>
    %cst_69 = arith.constant 1.000000e+00 : f32
    %184 = vector.broadcast %cst_69 : f32 to vector<8x128xf32>
    %185 = arith.addf %184, %183 : vector<8x128xf32>
    %186 = arith.divf %184, %185 : vector<8x128xf32>
    %187 = math.tanh %181 : vector<8x128xf32>
    %188 = arith.select %80, %187, %186 : vector<8x128xi1>, vector<8x128xf32>
    %189 = vector.extract_strided_slice %188 {offsets = [0, 0], sizes = [8, 32], strides = [1, 1]} : vector<8x128xf32> to vector<8x32xf32>
    %190 = vector.extract_strided_slice %188 {offsets = [0, 32], sizes = [8, 32], strides = [1, 1]} : vector<8x128xf32> to vector<8x32xf32>
    %191 = vector.extract_strided_slice %188 {offsets = [0, 64], sizes = [8, 32], strides = [1, 1]} : vector<8x128xf32> to vector<8x32xf32>
    %192 = vector.extract_strided_slice %188 {offsets = [0, 96], sizes = [8, 32], strides = [1, 1]} : vector<8x128xf32> to vector<8x32xf32>
    %193 = arith.mulf %190, %172 : vector<8x32xf32>
    %194 = arith.mulf %189, %191 : vector<8x32xf32>
    %195 = arith.addf %193, %194 : vector<8x32xf32>
    %196 = math.tanh %195 : vector<8x32xf32>
    %197 = arith.mulf %192, %196 : vector<8x32xf32>
    %c5_i32 = arith.constant 5 : i32
    %c8_i32_70 = arith.constant 8 : i32
    %198 = arith.muli %c5_i32, %c8_i32_70 : i32
    %199 = tpu.assume_multiple %198, 8 : i32
    %200 = arith.index_cast %199 : i32 to index
    %c0_71 = arith.constant 0 : index
    %201 = vector.load %arg10[%200, %c0_71] : memref<64x128xf32, #tpu.memory_space<vmem>>, vector<8x128xf32>
    %202 = arith.truncf %197 : vector<8x32xf32> to vector<8x32xbf16>
    %cst_72 = arith.constant dense<0.000000e+00> : vector<8x128xf32>
    %203 = tpu.matmul %202, %74, %cst_72 {dimension_numbers = #tpu.dot_dimension_numbers<[1], [0], [0], [1], [0, 0, 1, 1], [], []>} : vector<8x32xbf16>, vector<32x128xbf16>, vector<8x128xf32> -> vector<8x128xf32>
    %204 = arith.addf %201, %203 : vector<8x128xf32>
    %205 = arith.negf %204 : vector<8x128xf32>
    %206 = math.exp %205 : vector<8x128xf32>
    %cst_73 = arith.constant 1.000000e+00 : f32
    %207 = vector.broadcast %cst_73 : f32 to vector<8x128xf32>
    %208 = arith.addf %207, %206 : vector<8x128xf32>
    %209 = arith.divf %207, %208 : vector<8x128xf32>
    %210 = math.tanh %204 : vector<8x128xf32>
    %211 = arith.select %80, %210, %209 : vector<8x128xi1>, vector<8x128xf32>
    %212 = vector.extract_strided_slice %211 {offsets = [0, 0], sizes = [8, 32], strides = [1, 1]} : vector<8x128xf32> to vector<8x32xf32>
    %213 = vector.extract_strided_slice %211 {offsets = [0, 32], sizes = [8, 32], strides = [1, 1]} : vector<8x128xf32> to vector<8x32xf32>
    %214 = vector.extract_strided_slice %211 {offsets = [0, 64], sizes = [8, 32], strides = [1, 1]} : vector<8x128xf32> to vector<8x32xf32>
    %215 = vector.extract_strided_slice %211 {offsets = [0, 96], sizes = [8, 32], strides = [1, 1]} : vector<8x128xf32> to vector<8x32xf32>
    %216 = arith.mulf %213, %195 : vector<8x32xf32>
    %217 = arith.mulf %212, %214 : vector<8x32xf32>
    %218 = arith.addf %216, %217 : vector<8x32xf32>
    %219 = math.tanh %218 : vector<8x32xf32>
    %220 = arith.mulf %215, %219 : vector<8x32xf32>
    %c6_i32 = arith.constant 6 : i32
    %c8_i32_74 = arith.constant 8 : i32
    %221 = arith.muli %c6_i32, %c8_i32_74 : i32
    %222 = tpu.assume_multiple %221, 8 : i32
    %223 = arith.index_cast %222 : i32 to index
    %c0_75 = arith.constant 0 : index
    %224 = vector.load %arg10[%223, %c0_75] : memref<64x128xf32, #tpu.memory_space<vmem>>, vector<8x128xf32>
    %225 = arith.truncf %220 : vector<8x32xf32> to vector<8x32xbf16>
    %cst_76 = arith.constant dense<0.000000e+00> : vector<8x128xf32>
    %226 = tpu.matmul %225, %74, %cst_76 {dimension_numbers = #tpu.dot_dimension_numbers<[1], [0], [0], [1], [0, 0, 1, 1], [], []>} : vector<8x32xbf16>, vector<32x128xbf16>, vector<8x128xf32> -> vector<8x128xf32>
    %227 = arith.addf %224, %226 : vector<8x128xf32>
    %228 = arith.negf %227 : vector<8x128xf32>
    %229 = math.exp %228 : vector<8x128xf32>
    %cst_77 = arith.constant 1.000000e+00 : f32
    %230 = vector.broadcast %cst_77 : f32 to vector<8x128xf32>
    %231 = arith.addf %230, %229 : vector<8x128xf32>
    %232 = arith.divf %230, %231 : vector<8x128xf32>
    %233 = math.tanh %227 : vector<8x128xf32>
    %234 = arith.select %80, %233, %232 : vector<8x128xi1>, vector<8x128xf32>
    %235 = vector.extract_strided_slice %234 {offsets = [0, 0], sizes = [8, 32], strides = [1, 1]} : vector<8x128xf32> to vector<8x32xf32>
    %236 = vector.extract_strided_slice %234 {offsets = [0, 32], sizes = [8, 32], strides = [1, 1]} : vector<8x128xf32> to vector<8x32xf32>
    %237 = vector.extract_strided_slice %234 {offsets = [0, 64], sizes = [8, 32], strides = [1, 1]} : vector<8x128xf32> to vector<8x32xf32>
    %238 = vector.extract_strided_slice %234 {offsets = [0, 96], sizes = [8, 32], strides = [1, 1]} : vector<8x128xf32> to vector<8x32xf32>
    %239 = arith.mulf %236, %218 : vector<8x32xf32>
    %240 = arith.mulf %235, %237 : vector<8x32xf32>
    %241 = arith.addf %239, %240 : vector<8x32xf32>
    %242 = math.tanh %241 : vector<8x32xf32>
    %243 = arith.mulf %238, %242 : vector<8x32xf32>
    %c7_i32 = arith.constant 7 : i32
    %c8_i32_78 = arith.constant 8 : i32
    %244 = arith.muli %c7_i32, %c8_i32_78 : i32
    %245 = tpu.assume_multiple %244, 8 : i32
    %246 = arith.index_cast %245 : i32 to index
    %c0_79 = arith.constant 0 : index
    %247 = vector.load %arg10[%246, %c0_79] : memref<64x128xf32, #tpu.memory_space<vmem>>, vector<8x128xf32>
    %248 = arith.truncf %243 : vector<8x32xf32> to vector<8x32xbf16>
    %cst_80 = arith.constant dense<0.000000e+00> : vector<8x128xf32>
    %249 = tpu.matmul %248, %74, %cst_80 {dimension_numbers = #tpu.dot_dimension_numbers<[1], [0], [0], [1], [0, 0, 1, 1], [], []>} : vector<8x32xbf16>, vector<32x128xbf16>, vector<8x128xf32> -> vector<8x128xf32>
    %250 = arith.addf %247, %249 : vector<8x128xf32>
    %251 = arith.negf %250 : vector<8x128xf32>
    %252 = math.exp %251 : vector<8x128xf32>
    %cst_81 = arith.constant 1.000000e+00 : f32
    %253 = vector.broadcast %cst_81 : f32 to vector<8x128xf32>
    %254 = arith.addf %253, %252 : vector<8x128xf32>
    %255 = arith.divf %253, %254 : vector<8x128xf32>
    %256 = math.tanh %250 : vector<8x128xf32>
    %257 = arith.select %80, %256, %255 : vector<8x128xi1>, vector<8x128xf32>
    %258 = vector.extract_strided_slice %257 {offsets = [0, 0], sizes = [8, 32], strides = [1, 1]} : vector<8x128xf32> to vector<8x32xf32>
    %259 = vector.extract_strided_slice %257 {offsets = [0, 32], sizes = [8, 32], strides = [1, 1]} : vector<8x128xf32> to vector<8x32xf32>
    %260 = vector.extract_strided_slice %257 {offsets = [0, 64], sizes = [8, 32], strides = [1, 1]} : vector<8x128xf32> to vector<8x32xf32>
    %261 = vector.extract_strided_slice %257 {offsets = [0, 96], sizes = [8, 32], strides = [1, 1]} : vector<8x128xf32> to vector<8x32xf32>
    %262 = arith.mulf %259, %241 : vector<8x32xf32>
    %263 = arith.mulf %258, %260 : vector<8x32xf32>
    %264 = arith.addf %262, %263 : vector<8x32xf32>
    %265 = math.tanh %264 : vector<8x32xf32>
    %266 = arith.mulf %261, %265 : vector<8x32xf32>
    %c8_i32_82 = arith.constant 8 : i32
    %c0_83 = arith.constant 0 : index
    %c0_84 = arith.constant 0 : index
    %267 = vector.load %arg6[%c0_83, %c0_84] : memref<32x128xf32, #tpu.memory_space<vmem>>, vector<32x128xf32>
    %cst_85 = arith.constant dense<0.000000e+00> : vector<8x128xf32>
    %268 = tpu.matmul %266, %267, %cst_85 {dimension_numbers = #tpu.dot_dimension_numbers<[1], [0], [0], [1], [0, 0, 1, 1], [], []>} : vector<8x32xf32>, vector<32x128xf32>, vector<8x128xf32> -> vector<8x128xf32>
    %c0_86 = arith.constant 0 : index
    %c0_87 = arith.constant 0 : index
    %269 = vector.load %arg7[%c0_86, %c0_87] : memref<1x128xf32, #tpu.memory_space<vmem>>, vector<1x128xf32>
    %270 = vector.broadcast %269 : vector<1x128xf32> to vector<8x128xf32>
    %271 = arith.addf %268, %270 : vector<8x128xf32>
    %c0_88 = arith.constant 0 : index
    %c0_89 = arith.constant 0 : index
    %272 = vector.load %arg8[%c0_88, %c0_89] : memref<8x128xf32, #tpu.memory_space<vmem>>, vector<8x128xf32>
    tpu.vector_store %arg8[%c0_88, %c0_89], %271 {strides = array<i32>} : memref<8x128xf32, #tpu.memory_space<vmem>>, vector<8x128xf32>,
    return
  }
  func.func @transform_0(%arg0: i32, %arg1: memref<16xi32, #tpu.memory_space<smem>>) -> (i32, i32) {
    %c0_i32 = arith.constant 0 : i32
    %c0_i32_0 = arith.constant 0 : i32
    %c0_i32_1 = arith.constant 0 : i32
    return %c0_i32, %c0_i32_0 : i32, i32
  }
  func.func @transform_1(%arg0: i32, %arg1: memref<16xi32, #tpu.memory_space<smem>>) -> (i32, i32) {
    %c0_i32 = arith.constant 0 : i32
    %c0_i32_0 = arith.constant 0 : i32
    %c0_i32_1 = arith.constant 0 : i32
    return %c0_i32, %c0_i32_0 : i32, i32
  }
  func.func @transform_2(%arg0: i32, %arg1: memref<16xi32, #tpu.memory_space<smem>>) -> (i32, i32) {
    %c0_i32 = arith.constant 0 : i32
    %c0_i32_0 = arith.constant 0 : i32
    %c0_i32_1 = arith.constant 0 : i32
    return %c0_i32, %c0_i32_0 : i32, i32
  }
  func.func @transform_3(%arg0: i32, %arg1: memref<16xi32, #tpu.memory_space<smem>>) -> (i32, i32) {
    %c0_i32 = arith.constant 0 : i32
    %c0_i32_0 = arith.constant 0 : i32
    %c0_i32_1 = arith.constant 0 : i32
    return %c0_i32, %c0_i32_0 : i32, i32
  }
  func.func @transform_4(%arg0: i32, %arg1: memref<16xi32, #tpu.memory_space<smem>>) -> (i32, i32) {
    %c0_i32 = arith.constant 0 : i32
    %c0_i32_0 = arith.constant 0 : i32
    %c0_i32_1 = arith.constant 0 : i32
    return %c0_i32, %c0_i32_0 : i32, i32
  }
  func.func @transform_5(%arg0: i32, %arg1: memref<16xi32, #tpu.memory_space<smem>>) -> (i32, i32) {
    %c0_i32 = arith.constant 0 : i32
    %c0_i32_0 = arith.constant 0 : i32
    %c0_i32_1 = arith.constant 0 : i32
    return %c0_i32, %c0_i32_0 : i32, i32
  }
  func.func @transform_6(%arg0: i32, %arg1: memref<16xi32, #tpu.memory_space<smem>>) -> (i32, i32) {
    %c0_i32 = arith.constant 0 : i32
    %c0_i32_0 = arith.constant 0 : i32
    %c0_i32_1 = arith.constant 0 : i32
    return %c0_i32, %c0_i32_0 : i32, i32
  }
}

</mosaic_0001>

<llo_original>
// kernel: simple_lstm_forward.1
$region0: #{simple_lstm_forward.1}
  #allocation0 [shape = 'u32[]', space=smem, size = 0x4, offset = 0x4, fixed_abs, tag = 'smem constant byte address 0x4 - core index']
  #allocation1 [shape = 'u32[144,128]{1,0:T(1,128)}', space=vmem, size = 0x12000, scoped, tag = 'internal scratch']
  #allocation2 [shape = 'f32[64,16]{1,0:T(8,128)}', space=vmem, size = 0x8000, scoped, tag = 'scratch operand']
  #allocation3 [shape = 'f32[64,128]{1,0:T(8,128)}', space=vmem, size = 0x8000, scoped, tag = 'scratch operand']
  #allocation4 [shape = 's32[1]{0}', space=sflag, size = 0x4, scoped, tag = 'scoped memory for simple_lstm_forward.1']
  #allocation5 [shape = 'u8[512]{0}', space=smem, size = 0x200, scoped, tag = 'prefetched SMEM operand 0']
  %s0 = inlined_call_operand.vmem [shape: s32[16], index: 0, kind: input, shape index: {}]
  %s1 = inlined_call_operand.vmem [shape: f32[50,16], index: 1, kind: input, shape index: {}]
  %s2 = inlined_call_operand.vmem [shape: bf16[16,128], index: 2, kind: input, shape index: {}]
  %s3 = inlined_call_operand.vmem [shape: bf16[32,128], index: 3, kind: input, shape index: {}]
  %s4 = inlined_call_operand.vmem [shape: f32[1,128], index: 4, kind: input, shape index: {}]
  %s5 = inlined_call_operand.vmem [shape: f32[32,128], index: 5, kind: input, shape index: {}]
  %s6 = inlined_call_operand.vmem [shape: f32[1,128], index: 6, kind: input, shape index: {}]
  %s7 = inlined_call_operand.vmem [shape: f32[8,128], index: 7, kind: output, shape index: {}]
  %s8 = sld [smem:[#allocation0]]
  $region34: #{simple_lstm_forward.1} parent=0
    _
  %s10 = ssub.s32 1, %s8
  %s11 = scalar_select 0, %s10, %s8
  %s12 = sshll.u32 %s0, 4
  %s13 = int_to_ptr.vmem [resolvable:$true] %s12
  %15 = dma.vmem_to_smem %s13, 16, [#allocation5], [#allocation4]
  %16 = dma.done [#allocation4], 16
  %17 = sfence
  // Predicated region
  $region2: #{simple_lstm_forward.1} parent=0 // pred_check
    _
  $region3: #{simple_lstm_forward.1} parent=0 // pred_check_branch
    %19 = sbr.rel (0) target = $region5
  $region4: #{simple_lstm_forward.1} parent=0 // pred_region
    _
  $region5: #{simple_lstm_forward.1} parent=0 // pred_fallthru
    _
  // Predicated region
  $region6: #{simple_lstm_forward.1} parent=0 // pred_check
    _
  $region7: #{simple_lstm_forward.1} parent=0 // pred_check_branch
    %21 = sbr.rel (0) target = $region9
  $region8: #{simple_lstm_forward.1} parent=0 // pred_region
    _
  $region9: #{simple_lstm_forward.1} parent=0 // pred_fallthru
    _
  // Predicated region
  $region10: #{simple_lstm_forward.1} parent=0 // pred_check
    _
  $region11: #{simple_lstm_forward.1} parent=0 // pred_check_branch
    %23 = sbr.rel (0) target = $region13
  $region12: #{simple_lstm_forward.1} parent=0 // pred_region
    _
  $region13: #{simple_lstm_forward.1} parent=0 // pred_fallthru
    _
  // Predicated region
  $region14: #{simple_lstm_forward.1} parent=0 // pred_check
    _
  $region15: #{simple_lstm_forward.1} parent=0 // pred_check_branch
    %25 = sbr.rel (0) target = $region17
  $region16: #{simple_lstm_forward.1} parent=0 // pred_region
    _
  $region17: #{simple_lstm_forward.1} parent=0 // pred_fallthru
    _
  // Predicated region
  $region18: #{simple_lstm_forward.1} parent=0 // pred_check
    _
  $region19: #{simple_lstm_forward.1} parent=0 // pred_check_branch
    %27 = sbr.rel (0) target = $region21
  $region20: #{simple_lstm_forward.1} parent=0 // pred_region
    _
  $region21: #{simple_lstm_forward.1} parent=0 // pred_fallthru
    _
  // Predicated region
  $region22: #{simple_lstm_forward.1} parent=0 // pred_check
    _
  $region23: #{simple_lstm_forward.1} parent=0 // pred_check_branch
    %29 = sbr.rel (0) target = $region25
  $region24: #{simple_lstm_forward.1} parent=0 // pred_region
    _
  $region25: #{simple_lstm_forward.1} parent=0 // pred_fallthru
    _
  %vm31 = vcmask 130048
  %32 = vst.msk [vmem:[#allocation2] sm:$0xff] %vm31, 0.0
  %33 = vst.msk [vmem:[#allocation2 + $0x8] sm:$0xff] %vm31, 0.0
  %34 = vst.msk [vmem:[#allocation2 + $0x10] sm:$0xff] %vm31, 0.0
  %35 = vst.msk [vmem:[#allocation2 + $0x18] sm:$0xff] %vm31, 0.0
  %36 = vst.msk [vmem:[#allocation2 + $0x20] sm:$0xff] %vm31, 0.0
  %37 = vst.msk [vmem:[#allocation2 + $0x28] sm:$0xff] %vm31, 0.0
  %38 = vst.msk [vmem:[#allocation2 + $0x30] sm:$0xff] %vm31, 0.0
  %39 = vst.msk [vmem:[#allocation2 + $0x38] sm:$0xff] %vm31, 0.0
  %s40 = sld [smem:[#allocation5]]
  %s41 = scalar_lea.vmem %s1, %s40
  %v42 = vld [vmem:[%s41] sm:$0x1]
  %vm43 = vcmask 122880
  %44 = vst.msk [vmem:[#allocation2] sm:$0x1] %vm43, %v42
  %s45 = sld [smem:[#allocation5 + $0x1]]
  %s46 = scalar_lea.vmem %s1, %s45
  %v47 = vld [vmem:[%s46] sm:$0x1]
  %48 = vst.msk [vmem:[#allocation2 + $0x1] sm:$0x1] %vm43, %v47
  %s49 = sld [smem:[#allocation5 + $0x2]]
  %s50 = scalar_lea.vmem %s1, %s49
  %v51 = vld [vmem:[%s50] sm:$0x1]
  %52 = vst.msk [vmem:[#allocation2 + $0x8] sm:$0x1] %vm43, %v51
  %s53 = sld [smem:[#allocation5 + $0x3]]
  %s54 = scalar_lea.vmem %s1, %s53
  %v55 = vld [vmem:[%s54] sm:$0x1]
  %56 = vst.msk [vmem:[#allocation2 + $0x9] sm:$0x1] %vm43, %v55
  %s57 = sld [smem:[#allocation5 + $0x4]]
  %s58 = scalar_lea.vmem %s1, %s57
  %v59 = vld [vmem:[%s58] sm:$0x1]
  %60 = vst.msk [vmem:[#allocation2 + $0x10] sm:$0x1] %vm43, %v59
  %s61 = sld [smem:[#allocation5 + $0x5]]
  %s62 = scalar_lea.vmem %s1, %s61
  %v63 = vld [vmem:[%s62] sm:$0x1]
  %64 = vst.msk [vmem:[#allocation2 + $0x11] sm:$0x1] %vm43, %v63
  %s65 = sld [smem:[#allocation5 + $0x6]]
  %s66 = scalar_lea.vmem %s1, %s65
  %v67 = vld [vmem:[%s66] sm:$0x1]
  %68 = vst.msk [vmem:[#allocation2 + $0x18] sm:$0x1] %vm43, %v67
  %s69 = sld [smem:[#allocation5 + $0x7]]
  %s70 = scalar_lea.vmem %s1, %s69
  %v71 = vld [vmem:[%s70] sm:$0x1]
  %72 = vst.msk [vmem:[#allocation2 + $0x19] sm:$0x1] %vm43, %v71
  %s73 = sld [smem:[#allocation5 + $0x8]]
  %s74 = scalar_lea.vmem %s1, %s73
  %v75 = vld [vmem:[%s74] sm:$0x1]
  %76 = vst.msk [vmem:[#allocation2 + $0x20] sm:$0x1] %vm43, %v75
  %s77 = sld [smem:[#allocation5 + $0x9]]
  %s78 = scalar_lea.vmem %s1, %s77
  %v79 = vld [vmem:[%s78] sm:$0x1]
  %80 = vst.msk [vmem:[#allocation2 + $0x21] sm:$0x1] %vm43, %v79
  %s81 = sld [smem:[#allocation5 + $0xa]]
  %s82 = scalar_lea.vmem %s1, %s81
  %v83 = vld [vmem:[%s82] sm:$0x1]
  %84 = vst.msk [vmem:[#allocation2 + $0x28] sm:$0x1] %vm43, %v83
  %s85 = sld [smem:[#allocation5 + $0xb]]
  %s86 = scalar_lea.vmem %s1, %s85
  %v87 = vld [vmem:[%s86] sm:$0x1]
  %88 = vst.msk [vmem:[#allocation2 + $0x29] sm:$0x1] %vm43, %v87
  %s89 = sld [smem:[#allocation5 + $0xc]]
  %s90 = scalar_lea.vmem %s1, %s89
  %v91 = vld [vmem:[%s90] sm:$0x1]
  %92 = vst.msk [vmem:[#allocation2 + $0x30] sm:$0x1] %vm43, %v91
  %s93 = sld [smem:[#allocation5 + $0xd]]
  %s94 = scalar_lea.vmem %s1, %s93
  %v95 = vld [vmem:[%s94] sm:$0x1]
  %96 = vst.msk [vmem:[#allocation2 + $0x31] sm:$0x1] %vm43, %v95
  %s97 = sld [smem:[#allocation5 + $0xe]]
  %s98 = scalar_lea.vmem %s1, %s97
  %v99 = vld [vmem:[%s98] sm:$0x1]
  %100 = vst.msk [vmem:[#allocation2 + $0x38] sm:$0x1] %vm43, %v99
  %s101 = sld [smem:[#allocation5 + $0xf]]
  %s102 = scalar_lea.vmem %s1, %s101
  %v103 = vld [vmem:[%s102] sm:$0x1]
  %104 = vst.msk [vmem:[#allocation2 + $0x39] sm:$0x1] %vm43, %v103
  %v105 = vld [vmem:[#allocation2] sm:$0xff]
  %v106 = vld [vmem:[#allocation2 + $0x8] sm:$0xff]
  %v107 = vld [vmem:[#allocation2 + $0x10] sm:$0xff]
  %v108 = vld [vmem:[#allocation2 + $0x18] sm:$0xff]
  %v109 = vld [vmem:[#allocation2 + $0x20] sm:$0xff]
  %v110 = vld [vmem:[#allocation2 + $0x28] sm:$0xff]
  %v111 = vld [vmem:[#allocation2 + $0x30] sm:$0xff]
  %v112 = vld [vmem:[#allocation2 + $0x38] sm:$0xff]
  %v113 = vpack.c.bf16 %v106, %v105
  %v114 = vpack.c.bf16 %v108, %v107
  %v115 = vpack.c.bf16 %v110, %v109
  %v116 = vpack.c.bf16 %v112, %v111
  %v117 = vld [vmem:[%s2] sm:$0xf]
  %v118 = vld [vmem:[%s2 + $0x4] sm:$0xf]
  %v119 = vld [vmem:[%s4] sm:$0x1]
  %v121 = vlaneseq
  %v122 = vshrl.u32 %v121, 7
  %v123 = vsub.s32 0, %v122
  %v124 = vrot.slane %v119, %v123
  %v128 = vunpack.c.l.b16 %v117
  %v129 = vunpack.c.l.b16 %v118
  %v130 = vpack.c.b16 %v129, %v128
  %v133 = vsel %vm31, %v113, 0
  %v136 = vsel %vm31, %v114, 0
  %v139 = vsel %vm31, %v115, 0
  %v142 = vsel %vm31, %v116, 0
  %144 = vmatprep.subr.bf16.mxu0 0
  %145 = vmatpush1.bf16.msra.mxu0 %v130
  %146 = vmatprep.subr.bf16.mxu0 0
  %147 = vmatpush1.bf16.msra.mxu0 0
  %148 = vmatprep.subr.bf16.mxu0 0
  %149 = vmatpush1.bf16.msra.mxu0 0
  %150 = vmatprep.subr.bf16.mxu0 0
  %151 = vmatpush1.bf16.msra.mxu0 0
  %152 = vmatprep.subr.bf16.mxu0 0
  %153 = vmatpush1.bf16.msra.mxu0 0
  %154 = vmatprep.subr.bf16.mxu0 0
  %155 = vmatpush1.bf16.msra.mxu0 0
  %156 = vmatprep.subr.bf16.mxu0 0
  %157 = vmatpush1.bf16.msra.mxu0 0
  %158 = vmatprep.subr.bf16.mxu0 0
  %159 = vmatpush1.bf16.msra.mxu0 0
  %160 = vmatprep.subr.bf16.mxu0 0
  %161 = vmatpush1.bf16.msra.mxu0 0
  %162 = vmatprep.subr.bf16.mxu0 0
  %163 = vmatpush1.bf16.msra.mxu0 0
  %164 = vmatprep.subr.bf16.mxu0 0
  %165 = vmatpush1.bf16.msra.mxu0 0
  %166 = vmatprep.subr.bf16.mxu0 0
  %167 = vmatpush1.bf16.msra.mxu0 0
  %168 = vmatprep.subr.bf16.mxu0 0
  %169 = vmatpush1.bf16.msra.mxu0 0
  %170 = vmatprep.subr.bf16.mxu0 0
  %171 = vmatpush1.bf16.msra.mxu0 0
  %172 = vmatprep.subr.bf16.mxu0 0
  %173 = vmatpush1.bf16.msra.mxu0 0
  %174 = vmatprep.subr.bf16.mxu0 0
  %175 = vmatpush1.bf16.msra.mxu0 0
  %176 = vmatprep.mubr.bf16.mxu0 0
  %177 = vmatmul.mubr.bf16.gmra.mrb[0].mxu0 %v133
  %v178 = vpop.f32.mrb[0].mxu0
  %v179 = vadd.f32 %v124, %v178
  %v180 = vpop.f32.mrb[0].mxu0
  %v181 = vpop.f32.mrb[0].mxu0
  %v182 = vadd.f32 %v124, %v181
  %v183 = vpop.f32.mrb[0].mxu0
  %184 = vmatprep.mubr.bf16.mxu0 0
  %185 = vmatmul.mubr.bf16.gmra.mrb[0].mxu0 %v136
  %v186 = vpop.f32.mrb[0].mxu0
  %v187 = vadd.f32 %v124, %v186
  %v188 = vpop.f32.mrb[0].mxu0
  %v189 = vpop.f32.mrb[0].mxu0
  %v190 = vadd.f32 %v124, %v189
  %v191 = vpop.f32.mrb[0].mxu0
  %192 = vmatprep.mubr.bf16.mxu0 0
  %193 = vmatmul.mubr.bf16.gmra.mrb[0].mxu0 %v139
  %v194 = vpop.f32.mrb[0].mxu0
  %v195 = vadd.f32 %v124, %v194
  %v196 = vpop.f32.mrb[0].mxu0
  %v197 = vpop.f32.mrb[0].mxu0
  %v198 = vadd.f32 %v124, %v197
  %v199 = vpop.f32.mrb[0].mxu0
  %200 = vmatprep.mubr.bf16.mxu0 0
  %201 = vmatmul.mubr.bf16.gmra.mrb[0].mxu0 %v142
  %v202 = vpop.f32.mrb[0].mxu0
  %v203 = vadd.f32 %v124, %v202
  %v204 = vpop.f32.mrb[0].mxu0
  %v205 = vpop.f32.mrb[0].mxu0
  %v206 = vadd.f32 %v124, %v205
  %v207 = vpop.f32.mrb[0].mxu0
  %208 = vdwg.mxu0
  %209 = vst [vmem:[#allocation3] sm:$0xff] %v179
  %210 = vst [vmem:[#allocation3 + $0x8] sm:$0xff] %v182
  %211 = vst [vmem:[#allocation3 + $0x10] sm:$0xff] %v187
  %212 = vst [vmem:[#allocation3 + $0x18] sm:$0xff] %v190
  %213 = vst [vmem:[#allocation3 + $0x20] sm:$0xff] %v195
  %214 = vst [vmem:[#allocation3 + $0x28] sm:$0xff] %v198
  %215 = vst [vmem:[#allocation3 + $0x30] sm:$0xff] %v203
  %216 = vst [vmem:[#allocation3 + $0x38] sm:$0xff] %v206
  %v217 = vld [vmem:[%s3] sm:$0xf]
  %v218 = vld [vmem:[%s3 + $0x4] sm:$0xf]
  %v219 = vld [vmem:[%s3 + $0x8] sm:$0xf]
  %v220 = vld [vmem:[%s3 + $0xc] sm:$0xf]
  %v221 = vlaneseq
  %v222 = vand.u32 %v221, 127
  %vm223 = vcmp.ge.s32.totalorder %v222, 64
  %vm224 = vcmp.lt.s32.totalorder %v222, 96
  %vm225 = vmand %vm223, %vm224
  %v226 = vld [vmem:[#allocation3] sm:$0xff]
  %v231 = vunpack.c.l.b16 %v217
  %v232 = vunpack.c.l.b16 %v218
  %v233 = vunpack.c.l.b16 %v219
  %v234 = vunpack.c.l.b16 %v220
  %v235 = vpack.c.b16 %v232, %v231
  %v236 = vpack.c.b16 %v234, %v233
  %vm239 = vcmask 261120
  %v241 = vsel %vm239, 0, 0
  %243 = vmatprep.subr.bf16.mxu0 0
  %244 = vmatpush1.bf16.msra.mxu0 %v235
  %245 = vmatprep.subr.bf16.mxu0 0
  %246 = vmatpush1.bf16.msra.mxu0 %v236
  %247 = vmatprep.subr.bf16.mxu0 0
  %248 = vmatpush1.bf16.msra.mxu0 0
  %249 = vmatprep.subr.bf16.mxu0 0
  %250 = vmatpush1.bf16.msra.mxu0 0
  %251 = vmatprep.subr.bf16.mxu0 0
  %252 = vmatpush1.bf16.msra.mxu0 0
  %253 = vmatprep.subr.bf16.mxu0 0
  %254 = vmatpush1.bf16.msra.mxu0 0
  %255 = vmatprep.subr.bf16.mxu0 0
  %256 = vmatpush1.bf16.msra.mxu0 0
  %257 = vmatprep.subr.bf16.mxu0 0
  %258 = vmatpush1.bf16.msra.mxu0 0
  %259 = vmatprep.subr.bf16.mxu0 0
  %260 = vmatpush1.bf16.msra.mxu0 0
  %261 = vmatprep.subr.bf16.mxu0 0
  %262 = vmatpush1.bf16.msra.mxu0 0
  %263 = vmatprep.subr.bf16.mxu0 0
  %264 = vmatpush1.bf16.msra.mxu0 0
  %265 = vmatprep.subr.bf16.mxu0 0
  %266 = vmatpush1.bf16.msra.mxu0 0
  %267 = vmatprep.subr.bf16.mxu0 0
  %268 = vmatpush1.bf16.msra.mxu0 0
  %269 = vmatprep.subr.bf16.mxu0 0
  %270 = vmatpush1.bf16.msra.mxu0 0
  %271 = vmatprep.subr.bf16.mxu0 0
  %272 = vmatpush1.bf16.msra.mxu0 0
  %273 = vmatprep.subr.bf16.mxu0 0
  %274 = vmatpush1.bf16.msra.mxu0 0
  %275 = vmatprep.mubr.bf16.mxu0 0
  %276 = vmatmul.mubr.bf16.gmra.mrb[0].mxu0 %v241
  %v277 = vpop.f32.mrb[0].mxu0
  %v278 = vadd.f32 0.0, %v277
  %v279 = vpop.f32.mrb[0].mxu0
  %v280 = vpop.f32.mrb[0].mxu0
  %v281 = vpop.f32.mrb[0].mxu0
  %282 = vdwg.mxu0
  %v283 = vadd.f32 %v226, %v278
  %v284 = vxor.u32 %v283, 2147483648
  %v285 = vmul.f32 %v284, 1.442695
  %v286 = vpow.pop %v285
  %v287 = vadd.f32 %v286, 1.0
  %v288 = vrcp.pop %v287
  %v289 = vmul.f32 1.0, %v288
  %v290 = vtanh.pop %v283
  %v291 = vsel %vm225, %v290, %v289
  %v292 = vmul.f32 %v291, 0.0
  %294 = vrot.lane.b32.xlu0 %v291, 64
  %v295 = vpop.permute.xlu0 %294
  %v297 = vmul.f32 %v291, %v295
  %299 = vrot.lane.b32.xlu0 %v297, 32
  %v300 = vpop.permute.xlu0 %299
  %v302 = vadd.f32 %v292, %v300
  %v303 = vtanh.pop %v302
  %305 = vrot.lane.b32.xlu0 %v303, 64
  %v306 = vpop.permute.xlu0 %305
  %v308 = vmul.f32 %v291, %v306
  %s309 = scalar_lea.vmem [#allocation3], 8
  %v310 = vld [vmem:[%s309] sm:$0xff]
  %v311 = vpack.c.bf16 %v308, %v308
  %313 = vrot.lane.b32.xlu0 %v311, 32
  %v314 = vpop.permute.xlu0 %313
  %v316 = vsel %vm239, %v314, 0
  %318 = vmatprep.subr.bf16.mxu0 0
  %319 = vmatpush1.bf16.msra.mxu0 %v235
  %320 = vmatprep.subr.bf16.mxu0 0
  %321 = vmatpush1.bf16.msra.mxu0 %v236
  %322 = vmatprep.subr.bf16.mxu0 0
  %323 = vmatpush1.bf16.msra.mxu0 0
  %324 = vmatprep.subr.bf16.mxu0 0
  %325 = vmatpush1.bf16.msra.mxu0 0
  %326 = vmatprep.subr.bf16.mxu0 0
  %327 = vmatpush1.bf16.msra.mxu0 0
  %328 = vmatprep.subr.bf16.mxu0 0
  %329 = vmatpush1.bf16.msra.mxu0 0
  %330 = vmatprep.subr.bf16.mxu0 0
  %331 = vmatpush1.bf16.msra.mxu0 0
  %332 = vmatprep.subr.bf16.mxu0 0
  %333 = vmatpush1.bf16.msra.mxu0 0
  %334 = vmatprep.subr.bf16.mxu0 0
  %335 = vmatpush1.bf16.msra.mxu0 0
  %336 = vmatprep.subr.bf16.mxu0 0
  %337 = vmatpush1.bf16.msra.mxu0 0
  %338 = vmatprep.subr.bf16.mxu0 0
  %339 = vmatpush1.bf16.msra.mxu0 0
  %340 = vmatprep.subr.bf16.mxu0 0
  %341 = vmatpush1.bf16.msra.mxu0 0
  %342 = vmatprep.subr.bf16.mxu0 0
  %343 = vmatpush1.bf16.msra.mxu0 0
  %344 = vmatprep.subr.bf16.mxu0 0
  %345 = vmatpush1.bf16.msra.mxu0 0
  %346 = vmatprep.subr.bf16.mxu0 0
  %347 = vmatpush1.bf16.msra.mxu0 0
  %348 = vmatprep.subr.bf16.mxu0 0
  %349 = vmatpush1.bf16.msra.mxu0 0
  %350 = vmatprep.mubr.bf16.mxu0 0
  %351 = vmatmul.mubr.bf16.gmra.mrb[0].mxu0 %v316
  %v352 = vpop.f32.mrb[0].mxu0
  %v353 = vadd.f32 0.0, %v352
  %v354 = vpop.f32.mrb[0].mxu0
  %v355 = vpop.f32.mrb[0].mxu0
  %v356 = vpop.f32.mrb[0].mxu0
  %357 = vdwg.mxu0
  %v358 = vadd.f32 %v310, %v353
  %v359 = vxor.u32 %v358, 2147483648
  %v360 = vmul.f32 %v359, 1.442695
  %v361 = vpow.pop %v360
  %v362 = vadd.f32 %v361, 1.0
  %v363 = vrcp.pop %v362
  %v364 = vmul.f32 1.0, %v363
  %v365 = vtanh.pop %v358
  %v366 = vsel %vm225, %v365, %v364
  %v367 = vmul.f32 %v366, %v302
  %369 = vrot.lane.b32.xlu0 %v366, 64
  %v370 = vpop.permute.xlu0 %369
  %v372 = vmul.f32 %v366, %v370
  %374 = vrot.lane.b32.xlu0 %v372, 32
  %v375 = vpop.permute.xlu0 %374
  %v377 = vadd.f32 %v367, %v375
  %v378 = vtanh.pop %v377
  %380 = vrot.lane.b32.xlu0 %v378, 64
  %v381 = vpop.permute.xlu0 %380
  %v383 = vmul.f32 %v366, %v381
  %s384 = scalar_lea.vmem [#allocation3], 16
  %v385 = vld [vmem:[%s384] sm:$0xff]
  %v386 = vpack.c.bf16 %v383, %v383
  %388 = vrot.lane.b32.xlu0 %v386, 32
  %v389 = vpop.permute.xlu0 %388
  %v391 = vsel %vm239, %v389, 0
  %393 = vmatprep.subr.bf16.mxu0 0
  %394 = vmatpush1.bf16.msra.mxu0 %v235
  %395 = vmatprep.subr.bf16.mxu0 0
  %396 = vmatpush1.bf16.msra.mxu0 %v236
  %397 = vmatprep.subr.bf16.mxu0 0
  %398 = vmatpush1.bf16.msra.mxu0 0
  %399 = vmatprep.subr.bf16.mxu0 0
  %400 = vmatpush1.bf16.msra.mxu0 0
  %401 = vmatprep.subr.bf16.mxu0 0
  %402 = vmatpush1.bf16.msra.mxu0 0
  %403 = vmatprep.subr.bf16.mxu0 0
  %404 = vmatpush1.bf16.msra.mxu0 0
  %405 = vmatprep.subr.bf16.mxu0 0
  %406 = vmatpush1.bf16.msra.mxu0 0
  %407 = vmatprep.subr.bf16.mxu0 0
  %408 = vmatpush1.bf16.msra.mxu0 0
  %409 = vmatprep.subr.bf16.mxu0 0
  %410 = vmatpush1.bf16.msra.mxu0 0
  %411 = vmatprep.subr.bf16.mxu0 0
  %412 = vmatpush1.bf16.msra.mxu0 0
  %413 = vmatprep.subr.bf16.mxu0 0
  %414 = vmatpush1.bf16.msra.mxu0 0
  %415 = vmatprep.subr.bf16.mxu0 0
  %416 = vmatpush1.bf16.msra.mxu0 0
  %417 = vmatprep.subr.bf16.mxu0 0
  %418 = vmatpush1.bf16.msra.mxu0 0
  %419 = vmatprep.subr.bf16.mxu0 0
  %420 = vmatpush1.bf16.msra.mxu0 0
  %421 = vmatprep.subr.bf16.mxu0 0
  %422 = vmatpush1.bf16.msra.mxu0 0
  %423 = vmatprep.subr.bf16.mxu0 0
  %424 = vmatpush1.bf16.msra.mxu0 0
  %425 = vmatprep.mubr.bf16.mxu0 0
  %426 = vmatmul.mubr.bf16.gmra.mrb[0].mxu0 %v391
  %v427 = vpop.f32.mrb[0].mxu0
  %v428 = vadd.f32 0.0, %v427
  %v429 = vpop.f32.mrb[0].mxu0
  %v430 = vpop.f32.mrb[0].mxu0
  %v431 = vpop.f32.mrb[0].mxu0
  %432 = vdwg.mxu0
  %v433 = vadd.f32 %v385, %v428
  %v434 = vxor.u32 %v433, 2147483648
  %v435 = vmul.f32 %v434, 1.442695
  %v436 = vpow.pop %v435
  %v437 = vadd.f32 %v436, 1.0
  %v438 = vrcp.pop %v437
  %v439 = vmul.f32 1.0, %v438
  %v440 = vtanh.pop %v433
  %v441 = vsel %vm225, %v440, %v439
  %v442 = vmul.f32 %v441, %v377
  %444 = vrot.lane.b32.xlu0 %v441, 64
  %v445 = vpop.permute.xlu0 %444
  %v447 = vmul.f32 %v441, %v445
  %449 = vrot.lane.b32.xlu0 %v447, 32
  %v450 = vpop.permute.xlu0 %449
  %v452 = vadd.f32 %v442, %v450
  %v453 = vtanh.pop %v452
  %455 = vrot.lane.b32.xlu0 %v453, 64
  %v456 = vpop.permute.xlu0 %455
  %v458 = vmul.f32 %v441, %v456
  %s459 = scalar_lea.vmem [#allocation3], 24
  %v460 = vld [vmem:[%s459] sm:$0xff]
  %v461 = vpack.c.bf16 %v458, %v458
  %463 = vrot.lane.b32.xlu0 %v461, 32
  %v464 = vpop.permute.xlu0 %463
  %v466 = vsel %vm239, %v464, 0
  %468 = vmatprep.subr.bf16.mxu0 0
  %469 = vmatpush1.bf16.msra.mxu0 %v235
  %470 = vmatprep.subr.bf16.mxu0 0
  %471 = vmatpush1.bf16.msra.mxu0 %v236
  %472 = vmatprep.subr.bf16.mxu0 0
  %473 = vmatpush1.bf16.msra.mxu0 0
  %474 = vmatprep.subr.bf16.mxu0 0
  %475 = vmatpush1.bf16.msra.mxu0 0
  %476 = vmatprep.subr.bf16.mxu0 0
  %477 = vmatpush1.bf16.msra.mxu0 0
  %478 = vmatprep.subr.bf16.mxu0 0
  %479 = vmatpush1.bf16.msra.mxu0 0
  %480 = vmatprep.subr.bf16.mxu0 0
  %481 = vmatpush1.bf16.msra.mxu0 0
  %482 = vmatprep.subr.bf16.mxu0 0
  %483 = vmatpush1.bf16.msra.mxu0 0
  %484 = vmatprep.subr.bf16.mxu0 0
  %485 = vmatpush1.bf16.msra.mxu0 0
  %486 = vmatprep.subr.bf16.mxu0 0
  %487 = vmatpush1.bf16.msra.mxu0 0
  %488 = vmatprep.subr.bf16.mxu0 0
  %489 = vmatpush1.bf16.msra.mxu0 0
  %490 = vmatprep.subr.bf16.mxu0 0
  %491 = vmatpush1.bf16.msra.mxu0 0
  %492 = vmatprep.subr.bf16.mxu0 0
  %493 = vmatpush1.bf16.msra.mxu0 0
  %494 = vmatprep.subr.bf16.mxu0 0
  %495 = vmatpush1.bf16.msra.mxu0 0
  %496 = vmatprep.subr.bf16.mxu0 0
  %497 = vmatpush1.bf16.msra.mxu0 0
  %498 = vmatprep.subr.bf16.mxu0 0
  %499 = vmatpush1.bf16.msra.mxu0 0
  %500 = vmatprep.mubr.bf16.mxu0 0
  %501 = vmatmul.mubr.bf16.gmra.mrb[0].mxu0 %v466
  %v502 = vpop.f32.mrb[0].mxu0
  %v503 = vadd.f32 0.0, %v502
  %v504 = vpop.f32.mrb[0].mxu0
  %v505 = vpop.f32.mrb[0].mxu0
  %v506 = vpop.f32.mrb[0].mxu0
  %507 = vdwg.mxu0
  %v508 = vadd.f32 %v460, %v503
  %v509 = vxor.u32 %v508, 2147483648
  %v510 = vmul.f32 %v509, 1.442695
  %v511 = vpow.pop %v510
  %v512 = vadd.f32 %v511, 1.0
  %v513 = vrcp.pop %v512
  %v514 = vmul.f32 1.0, %v513
  %v515 = vtanh.pop %v508
  %v516 = vsel %vm225, %v515, %v514
  %v517 = vmul.f32 %v516, %v452
  %519 = vrot.lane.b32.xlu0 %v516, 64
  %v520 = vpop.permute.xlu0 %519
  %v522 = vmul.f32 %v516, %v520
  %524 = vrot.lane.b32.xlu0 %v522, 32
  %v525 = vpop.permute.xlu0 %524
  %v527 = vadd.f32 %v517, %v525
  %v528 = vtanh.pop %v527
  %530 = vrot.lane.b32.xlu0 %v528, 64
  %v531 = vpop.permute.xlu0 %530
  %v533 = vmul.f32 %v516, %v531
  %s534 = scalar_lea.vmem [#allocation3], 32
  %v535 = vld [vmem:[%s534] sm:$0xff]
  %v536 = vpack.c.bf16 %v533, %v533
  %538 = vrot.lane.b32.xlu0 %v536, 32
  %v539 = vpop.permute.xlu0 %538
  %v541 = vsel %vm239, %v539, 0
  %543 = vmatprep.subr.bf16.mxu0 0
  %544 = vmatpush1.bf16.msra.mxu0 %v235
  %545 = vmatprep.subr.bf16.mxu0 0
  %546 = vmatpush1.bf16.msra.mxu0 %v236
  %547 = vmatprep.subr.bf16.mxu0 0
  %548 = vmatpush1.bf16.msra.mxu0 0
  %549 = vmatprep.subr.bf16.mxu0 0
  %550 = vmatpush1.bf16.msra.mxu0 0
  %551 = vmatprep.subr.bf16.mxu0 0
  %552 = vmatpush1.bf16.msra.mxu0 0
  %553 = vmatprep.subr.bf16.mxu0 0
  %554 = vmatpush1.bf16.msra.mxu0 0
  %555 = vmatprep.subr.bf16.mxu0 0
  %556 = vmatpush1.bf16.msra.mxu0 0
  %557 = vmatprep.subr.bf16.mxu0 0
  %558 = vmatpush1.bf16.msra.mxu0 0
  %559 = vmatprep.subr.bf16.mxu0 0
  %560 = vmatpush1.bf16.msra.mxu0 0
  %561 = vmatprep.subr.bf16.mxu0 0
  %562 = vmatpush1.bf16.msra.mxu0 0
  %563 = vmatprep.subr.bf16.mxu0 0
  %564 = vmatpush1.bf16.msra.mxu0 0
  %565 = vmatprep.subr.bf16.mxu0 0
  %566 = vmatpush1.bf16.msra.mxu0 0
  %567 = vmatprep.subr.bf16.mxu0 0
  %568 = vmatpush1.bf16.msra.mxu0 0
  %569 = vmatprep.subr.bf16.mxu0 0
  %570 = vmatpush1.bf16.msra.mxu0 0
  %571 = vmatprep.subr.bf16.mxu0 0
  %572 = vmatpush1.bf16.msra.mxu0 0
  %573 = vmatprep.subr.bf16.mxu0 0
  %574 = vmatpush1.bf16.msra.mxu0 0
  %575 = vmatprep.mubr.bf16.mxu0 0
  %576 = vmatmul.mubr.bf16.gmra.mrb[0].mxu0 %v541
  %v577 = vpop.f32.mrb[0].mxu0
  %v578 = vadd.f32 0.0, %v577
  %v579 = vpop.f32.mrb[0].mxu0
  %v580 = vpop.f32.mrb[0].mxu0
  %v581 = vpop.f32.mrb[0].mxu0
  %582 = vdwg.mxu0
  %v583 = vadd.f32 %v535, %v578
  %v584 = vxor.u32 %v583, 2147483648
  %v585 = vmul.f32 %v584, 1.442695
  %v586 = vpow.pop %v585
  %v587 = vadd.f32 %v586, 1.0
  %v588 = vrcp.pop %v587
  %v589 = vmul.f32 1.0, %v588
  %v590 = vtanh.pop %v583
  %v591 = vsel %vm225, %v590, %v589
  %v592 = vmul.f32 %v591, %v527
  %594 = vrot.lane.b32.xlu0 %v591, 64
  %v595 = vpop.permute.xlu0 %594
  %v597 = vmul.f32 %v591, %v595
  %599 = vrot.lane.b32.xlu0 %v597, 32
  %v600 = vpop.permute.xlu0 %599
  %v602 = vadd.f32 %v592, %v600
  %v603 = vtanh.pop %v602
  %605 = vrot.lane.b32.xlu0 %v603, 64
  %v606 = vpop.permute.xlu0 %605
  %v608 = vmul.f32 %v591, %v606
  %s609 = scalar_lea.vmem [#allocation3], 40
  %v610 = vld [vmem:[%s609] sm:$0xff]
  %v611 = vpack.c.bf16 %v608, %v608
  %613 = vrot.lane.b32.xlu0 %v611, 32
  %v614 = vpop.permute.xlu0 %613
  %v616 = vsel %vm239, %v614, 0
  %618 = vmatprep.subr.bf16.mxu0 0
  %619 = vmatpush1.bf16.msra.mxu0 %v235
  %620 = vmatprep.subr.bf16.mxu0 0
  %621 = vmatpush1.bf16.msra.mxu0 %v236
  %622 = vmatprep.subr.bf16.mxu0 0
  %623 = vmatpush1.bf16.msra.mxu0 0
  %624 = vmatprep.subr.bf16.mxu0 0
  %625 = vmatpush1.bf16.msra.mxu0 0
  %626 = vmatprep.subr.bf16.mxu0 0
  %627 = vmatpush1.bf16.msra.mxu0 0
  %628 = vmatprep.subr.bf16.mxu0 0
  %629 = vmatpush1.bf16.msra.mxu0 0
  %630 = vmatprep.subr.bf16.mxu0 0
  %631 = vmatpush1.bf16.msra.mxu0 0
  %632 = vmatprep.subr.bf16.mxu0 0
  %633 = vmatpush1.bf16.msra.mxu0 0
  %634 = vmatprep.subr.bf16.mxu0 0
  %635 = vmatpush1.bf16.msra.mxu0 0
  %636 = vmatprep.subr.bf16.mxu0 0
  %637 = vmatpush1.bf16.msra.mxu0 0
  %638 = vmatprep.subr.bf16.mxu0 0
  %639 = vmatpush1.bf16.msra.mxu0 0
  %640 = vmatprep.subr.bf16.mxu0 0
  %641 = vmatpush1.bf16.msra.mxu0 0
  %642 = vmatprep.subr.bf16.mxu0 0
  %643 = vmatpush1.bf16.msra.mxu0 0
  %644 = vmatprep.subr.bf16.mxu0 0
  %645 = vmatpush1.bf16.msra.mxu0 0
  %646 = vmatprep.subr.bf16.mxu0 0
  %647 = vmatpush1.bf16.msra.mxu0 0
  %648 = vmatprep.subr.bf16.mxu0 0
  %649 = vmatpush1.bf16.msra.mxu0 0
  %650 = vmatprep.mubr.bf16.mxu0 0
  %651 = vmatmul.mubr.bf16.gmra.mrb[0].mxu0 %v616
  %v652 = vpop.f32.mrb[0].mxu0
  %v653 = vadd.f32 0.0, %v652
  %v654 = vpop.f32.mrb[0].mxu0
  %v655 = vpop.f32.mrb[0].mxu0
  %v656 = vpop.f32.mrb[0].mxu0
  %657 = vdwg.mxu0
  %v658 = vadd.f32 %v610, %v653
  %v659 = vxor.u32 %v658, 2147483648
  %v660 = vmul.f32 %v659, 1.442695
  %v661 = vpow.pop %v660
  %v662 = vadd.f32 %v661, 1.0
  %v663 = vrcp.pop %v662
  %v664 = vmul.f32 1.0, %v663
  %v665 = vtanh.pop %v658
  %v666 = vsel %vm225, %v665, %v664
  %v667 = vmul.f32 %v666, %v602
  %669 = vrot.lane.b32.xlu0 %v666, 64
  %v670 = vpop.permute.xlu0 %669
  %v672 = vmul.f32 %v666, %v670
  %674 = vrot.lane.b32.xlu0 %v672, 32
  %v675 = vpop.permute.xlu0 %674
  %v677 = vadd.f32 %v667, %v675
  %v678 = vtanh.pop %v677
  %680 = vrot.lane.b32.xlu0 %v678, 64
  %v681 = vpop.permute.xlu0 %680
  %v683 = vmul.f32 %v666, %v681
  %s684 = scalar_lea.vmem [#allocation3], 48
  %v685 = vld [vmem:[%s684] sm:$0xff]
  %v686 = vpack.c.bf16 %v683, %v683
  %688 = vrot.lane.b32.xlu0 %v686, 32
  %v689 = vpop.permute.xlu0 %688
  %v691 = vsel %vm239, %v689, 0
  %693 = vmatprep.subr.bf16.mxu0 0
  %694 = vmatpush1.bf16.msra.mxu0 %v235
  %695 = vmatprep.subr.bf16.mxu0 0
  %696 = vmatpush1.bf16.msra.mxu0 %v236
  %697 = vmatprep.subr.bf16.mxu0 0
  %698 = vmatpush1.bf16.msra.mxu0 0
  %699 = vmatprep.subr.bf16.mxu0 0
  %700 = vmatpush1.bf16.msra.mxu0 0
  %701 = vmatprep.subr.bf16.mxu0 0
  %702 = vmatpush1.bf16.msra.mxu0 0
  %703 = vmatprep.subr.bf16.mxu0 0
  %704 = vmatpush1.bf16.msra.mxu0 0
  %705 = vmatprep.subr.bf16.mxu0 0
  %706 = vmatpush1.bf16.msra.mxu0 0
  %707 = vmatprep.subr.bf16.mxu0 0
  %708 = vmatpush1.bf16.msra.mxu0 0
  %709 = vmatprep.subr.bf16.mxu0 0
  %710 = vmatpush1.bf16.msra.mxu0 0
  %711 = vmatprep.subr.bf16.mxu0 0
  %712 = vmatpush1.bf16.msra.mxu0 0
  %713 = vmatprep.subr.bf16.mxu0 0
  %714 = vmatpush1.bf16.msra.mxu0 0
  %715 = vmatprep.subr.bf16.mxu0 0
  %716 = vmatpush1.bf16.msra.mxu0 0
  %717 = vmatprep.subr.bf16.mxu0 0
  %718 = vmatpush1.bf16.msra.mxu0 0
  %719 = vmatprep.subr.bf16.mxu0 0
  %720 = vmatpush1.bf16.msra.mxu0 0
  %721 = vmatprep.subr.bf16.mxu0 0
  %722 = vmatpush1.bf16.msra.mxu0 0
  %723 = vmatprep.subr.bf16.mxu0 0
  %724 = vmatpush1.bf16.msra.mxu0 0
  %725 = vmatprep.mubr.bf16.mxu0 0
  %726 = vmatmul.mubr.bf16.gmra.mrb[0].mxu0 %v691
  %v727 = vpop.f32.mrb[0].mxu0
  %v728 = vadd.f32 0.0, %v727
  %v729 = vpop.f32.mrb[0].mxu0
  %v730 = vpop.f32.mrb[0].mxu0
  %v731 = vpop.f32.mrb[0].mxu0
  %732 = vdwg.mxu0
  %v733 = vadd.f32 %v685, %v728
  %v734 = vxor.u32 %v733, 2147483648
  %v735 = vmul.f32 %v734, 1.442695
  %v736 = vpow.pop %v735
  %v737 = vadd.f32 %v736, 1.0
  %v738 = vrcp.pop %v737
  %v739 = vmul.f32 1.0, %v738
  %v740 = vtanh.pop %v733
  %v741 = vsel %vm225, %v740, %v739
  %v742 = vmul.f32 %v741, %v677
  %744 = vrot.lane.b32.xlu0 %v741, 64
  %v745 = vpop.permute.xlu0 %744
  %v747 = vmul.f32 %v741, %v745
  %749 = vrot.lane.b32.xlu0 %v747, 32
  %v750 = vpop.permute.xlu0 %749
  %v752 = vadd.f32 %v742, %v750
  %v753 = vtanh.pop %v752
  %755 = vrot.lane.b32.xlu0 %v753, 64
  %v756 = vpop.permute.xlu0 %755
  %v758 = vmul.f32 %v741, %v756
  %s759 = scalar_lea.vmem [#allocation3], 56
  %v760 = vld [vmem:[%s759] sm:$0xff]
  %v761 = vpack.c.bf16 %v758, %v758
  %763 = vrot.lane.b32.xlu0 %v761, 32
  %v764 = vpop.permute.xlu0 %763
  %v766 = vsel %vm239, %v764, 0
  %768 = vmatprep.subr.bf16.mxu0 0
  %769 = vmatpush1.bf16.msra.mxu0 %v235
  %770 = vmatprep.subr.bf16.mxu0 0
  %771 = vmatpush1.bf16.msra.mxu0 %v236
  %772 = vmatprep.subr.bf16.mxu0 0
  %773 = vmatpush1.bf16.msra.mxu0 0
  %774 = vmatprep.subr.bf16.mxu0 0
  %775 = vmatpush1.bf16.msra.mxu0 0
  %776 = vmatprep.subr.bf16.mxu0 0
  %777 = vmatpush1.bf16.msra.mxu0 0
  %778 = vmatprep.subr.bf16.mxu0 0
  %779 = vmatpush1.bf16.msra.mxu0 0
  %780 = vmatprep.subr.bf16.mxu0 0
  %781 = vmatpush1.bf16.msra.mxu0 0
  %782 = vmatprep.subr.bf16.mxu0 0
  %783 = vmatpush1.bf16.msra.mxu0 0
  %784 = vmatprep.subr.bf16.mxu0 0
  %785 = vmatpush1.bf16.msra.mxu0 0
  %786 = vmatprep.subr.bf16.mxu0 0
  %787 = vmatpush1.bf16.msra.mxu0 0
  %788 = vmatprep.subr.bf16.mxu0 0
  %789 = vmatpush1.bf16.msra.mxu0 0
  %790 = vmatprep.subr.bf16.mxu0 0
  %791 = vmatpush1.bf16.msra.mxu0 0
  %792 = vmatprep.subr.bf16.mxu0 0
  %793 = vmatpush1.bf16.msra.mxu0 0
  %794 = vmatprep.subr.bf16.mxu0 0
  %795 = vmatpush1.bf16.msra.mxu0 0
  %796 = vmatprep.subr.bf16.mxu0 0
  %797 = vmatpush1.bf16.msra.mxu0 0
  %798 = vmatprep.subr.bf16.mxu0 0
  %799 = vmatpush1.bf16.msra.mxu0 0
  %800 = vmatprep.mubr.bf16.mxu0 0
  %801 = vmatmul.mubr.bf16.gmra.mrb[0].mxu0 %v766
  %v802 = vpop.f32.mrb[0].mxu0
  %v803 = vadd.f32 0.0, %v802
  %v804 = vpop.f32.mrb[0].mxu0
  %v805 = vpop.f32.mrb[0].mxu0
  %v806 = vpop.f32.mrb[0].mxu0
  %807 = vdwg.mxu0
  %v808 = vadd.f32 %v760, %v803
  %v809 = vxor.u32 %v808, 2147483648
  %v810 = vmul.f32 %v809, 1.442695
  %v811 = vpow.pop %v810
  %v812 = vadd.f32 %v811, 1.0
  %v813 = vrcp.pop %v812
  %v814 = vmul.f32 1.0, %v813
  %v815 = vtanh.pop %v808
  %v816 = vsel %vm225, %v815, %v814
  %v817 = vmul.f32 %v816, %v752
  %819 = vrot.lane.b32.xlu0 %v816, 64
  %v820 = vpop.permute.xlu0 %819
  %v822 = vmul.f32 %v816, %v820
  %824 = vrot.lane.b32.xlu0 %v822, 32
  %v825 = vpop.permute.xlu0 %824
  %v827 = vadd.f32 %v817, %v825
  %v828 = vtanh.pop %v827
  %830 = vrot.lane.b32.xlu0 %v828, 64
  %v831 = vpop.permute.xlu0 %830
  %v833 = vmul.f32 %v816, %v831
  %v834 = vld [vmem:[%s5] sm:$0xff]
  %v835 = vld [vmem:[%s5 + $0x8] sm:$0xff]
  %v836 = vld [vmem:[%s5 + $0x10] sm:$0xff]
  %v837 = vld [vmem:[%s5 + $0x18] sm:$0xff]
  %v838 = vld [vmem:[%s6] sm:$0x1]
  %v840 = vlaneseq
  %v841 = vshrl.u32 %v840, 7
  %v842 = vsub.s32 0, %v841
  %v843 = vrot.slane %v838, %v842
  %846 = vrot.lane.b32.xlu0 %v833, 32
  %v847 = vpop.permute.xlu0 %846
  %v848 = vsel %vm239, %v847, 0
  %850 = vmatprep.subr.mxu0 0.0
  %851 = vmatpush1.msra.mxu0 %v834
  %852 = vmatprep.subr.mxu0 0.0
  %853 = vmatpush1.msra.mxu0 %v835
  %854 = vmatprep.subr.mxu0 0.0
  %855 = vmatpush1.msra.mxu0 %v836
  %856 = vmatprep.subr.mxu0 0.0
  %857 = vmatpush1.msra.mxu0 %v837
  %858 = vmatprep.subr.mxu0 0.0
  %859 = vmatpush1.msra.mxu0 0.0
  %860 = vmatprep.subr.mxu0 0.0
  %861 = vmatpush1.msra.mxu0 0.0
  %862 = vmatprep.subr.mxu0 0.0
  %863 = vmatpush1.msra.mxu0 0.0
  %864 = vmatprep.subr.mxu0 0.0
  %865 = vmatpush1.msra.mxu0 0.0
  %866 = vmatprep.subr.mxu0 0.0
  %867 = vmatpush1.msra.mxu0 0.0
  %868 = vmatprep.subr.mxu0 0.0
  %869 = vmatpush1.msra.mxu0 0.0
  %870 = vmatprep.subr.mxu0 0.0
  %871 = vmatpush1.msra.mxu0 0.0
  %872 = vmatprep.subr.mxu0 0.0
  %873 = vmatpush1.msra.mxu0 0.0
  %874 = vmatprep.subr.mxu0 0.0
  %875 = vmatpush1.msra.mxu0 0.0
  %876 = vmatprep.subr.mxu0 0.0
  %877 = vmatpush1.msra.mxu0 0.0
  %878 = vmatprep.subr.mxu0 0.0
  %879 = vmatpush1.msra.mxu0 0.0
  %880 = vmatprep.subr.mxu0 0.0
  %881 = vmatpush1.msra.mxu0 0.0
  %882 = vmatprep.subr.mxu0 0.0
  %883 = vmatpush1.msra.mxu0 0.0
  %884 = vmatprep.subr.mxu0 0.0
  %885 = vmatpush1.msra.mxu0 0.0
  %886 = vmatprep.subr.mxu0 0.0
  %887 = vmatpush1.msra.mxu0 0.0
  %888 = vmatprep.subr.mxu0 0.0
  %889 = vmatpush1.msra.mxu0 0.0
  %890 = vmatprep.subr.mxu0 0.0
  %891 = vmatpush1.msra.mxu0 0.0
  %892 = vmatprep.subr.mxu0 0.0
  %893 = vmatpush1.msra.mxu0 0.0
  %894 = vmatprep.subr.mxu0 0.0
  %895 = vmatpush1.msra.mxu0 0.0
  %896 = vmatprep.subr.mxu0 0.0
  %897 = vmatpush1.msra.mxu0 0.0
  %898 = vmatprep.subr.mxu0 0.0
  %899 = vmatpush1.msra.mxu0 0.0
  %900 = vmatprep.subr.mxu0 0.0
  %901 = vmatpush1.msra.mxu0 0.0
  %902 = vmatprep.subr.mxu0 0.0
  %903 = vmatpush1.msra.mxu0 0.0
  %904 = vmatprep.subr.mxu0 0.0
  %905 = vmatpush1.msra.mxu0 0.0
  %906 = vmatprep.subr.mxu0 0.0
  %907 = vmatpush1.msra.mxu0 0.0
  %908 = vmatprep.subr.mxu0 0.0
  %909 = vmatpush1.msra.mxu0 0.0
  %910 = vmatprep.subr.mxu0 0.0
  %911 = vmatpush1.msra.mxu0 0.0
  %912 = vmatprep.subr.mxu0 0.0
  %913 = vmatpush1.msra.mxu0 0.0
  %914 = vmatprep.mubr.f32.mxu0 0.0
  %915 = vmatmul.mubr.f32.gmra.mrb[0].mxu0 %v848
  %v916 = vpop.f32.mrb[0].mxu0
  %v917 = vadd.f32 %v843, %v916
  %v918 = vpop.f32.mrb[0].mxu0
  %919 = vdwg.mxu0
  %920 = vst [vmem:[%s7] sm:$0xff] %v917
  // Predicated region
  $region26: #{simple_lstm_forward.1} parent=0 // pred_check
    _
  $region27: #{simple_lstm_forward.1} parent=0 // pred_check_branch
    %922 = sbr.rel (0) target = $region29
  $region28: #{simple_lstm_forward.1} parent=0 // pred_region
    _
  $region29: #{simple_lstm_forward.1} parent=0 // pred_fallthru
    _
  // Predicated region
  $region30: #{simple_lstm_forward.1} parent=0 // pred_check
    _
  $region31: #{simple_lstm_forward.1} parent=0 // pred_check_branch
    %924 = sbr.rel (0) target = $region33
  $region32: #{simple_lstm_forward.1} parent=0 // pred_region
    _
  $region33: #{simple_lstm_forward.1} parent=0 // pred_fallthru
    _

</llo_original>
